<compile_context>
chip_gen: v6e
topology: v6e:2x2x1
jax: 0.10.0
libtpu: 0.0.40
codegen_flags: <defaults>
</compile_context>

<pallas_src>
import numpy as np
import jax
import jax.numpy as jnp
from jax.experimental import pallas as pl
from jax.experimental.pallas import tpu as pltpu

F_CH = 40      # fixed conv channel width of the module
N_TAPS = 11    # conv3 / tconv3 kernel width


def _round_up(n, m):
    return (n + m - 1) // m * m


# ---------------------------------------------------------------------------
# Fused kernel: 7 matmuls, no layout matmuls, no in-kernel reshapes.
# ---------------------------------------------------------------------------
def _arxiv_fused_kernel(x_ref, bias_ref,
                        w12_ref, g1_ref, m2_ref, m3_ref, g4_ref, wt2_ref, wt1_ref,
                        bott_ref, dec_ref):
    def mm(a, w_ref):
        # bf16 MXU operands, f32 accumulation; elementwise stays f32.
        return jnp.dot(a.astype(jnp.bfloat16), w_ref[...],
                       preferred_element_type=jnp.float32)

    def bias(row, n):
        return bias_ref[row:row + 1, 0:n]           # (1, n) f32, broadcasts over batch

    x = x_ref[...]                                                         # (TB, W*C)
    # conv1 ∘ conv2 (block-diagonal over positions) + ReLU  (relu(drp(relu)) == relu)
    h2 = jnp.maximum(mm(x, w12_ref) + bias(0, w12_ref.shape[1]), 0.0)      # (TB, 20W)
    # conv3 ∘ flatten ∘ lin1 (exact fold, conv3 has no activation)
    z1 = mm(h2, g1_ref) + bias(1, g1_ref.shape[1])                         # (TB, 10W)
    # lin2 -> bottleneck
    bott = mm(z1, m2_ref) + bias(2, m2_ref.shape[1])                       # (TB, E)
    bott_ref[...] = bott
    # lin3
    z3 = mm(bott, m3_ref) + bias(3, m3_ref.shape[1])                       # (TB, 10W)
    # lin4 ∘ reshape ∘ tconv3 (exact fold) + ReLU
    ht3 = jnp.maximum(mm(z3, g4_ref) + bias(4, g4_ref.shape[1]), 0.0)      # (TB, 20W)
    # tconv2: stride-2 upsample folded into the lane layout (block-diag) + ReLU
    u2 = jnp.maximum(mm(ht3, wt2_ref) + bias(5, wt2_ref.shape[1]), 0.0)    # (TB, 40W)
    # tconv1 back to per-position channel lanes (block-diag)
    dec_ref[...] = mm(u2, wt1_ref) + bias(6, wt1_ref.shape[1])             # (TB, W*2C/2)


# ---------------------------------------------------------------------------
# Raw parameters (identical tensor shapes to the nn.Module).
# ---------------------------------------------------------------------------
def init_raw_params(key, input_dim, encoding_dim, channel_count):
    ks = jax.random.split(key, 20)

    def w(k, shape):
        return (0.05 * jax.random.normal(k, shape)).astype(jnp.float32)

    p = {}
    p["conv1_w"] = w(ks[0], (40, 1, channel_count, 1));  p["conv1_b"] = w(ks[1], (40,))
    p["conv2_w"] = w(ks[2], (40, 40, 1, 2));             p["conv2_b"] = w(ks[3], (40,))
    p["conv3_w"] = w(ks[4], (40, 40, 1, 11));            p["conv3_b"] = w(ks[5], (40,))
    p["lin1_w"] = w(ks[6], (input_dim * 10, input_dim * 20)); p["lin1_b"] = w(ks[7], (input_dim * 10,))
    p["lin2_w"] = w(ks[8], (encoding_dim, input_dim * 10));   p["lin2_b"] = w(ks[9], (encoding_dim,))
    p["lin3_w"] = w(ks[10], (input_dim * 10, encoding_dim));  p["lin3_b"] = w(ks[11], (input_dim * 10,))
    p["lin4_w"] = w(ks[12], (input_dim * 20, input_dim * 10)); p["lin4_b"] = w(ks[13], (input_dim * 20,))
    p["tconv1_w"] = w(ks[14], (40, 1, channel_count, 1)); p["tconv1_b"] = w(ks[15], (1,))
    p["tconv2_w"] = w(ks[16], (40, 40, 1, 2));            p["tconv2_b"] = w(ks[17], (40,))
    p["tconv3_w"] = w(ks[18], (40, 40, 1, 11));           p["tconv3_b"] = w(ks[19], (40,))
    return p


# ---------------------------------------------------------------------------
# One-time layer folding into matmul-ready slabs (numpy, at init).
# Row/lane layouts:
#   xrow[b, w*C + c]            = x[b, 0, c, w]
#   h2row[b, s*40 + i]          = conv2-out[b, i, s]         (s = w//2)
#   ht3row[b, s*40 + o]         = tconv3-pre[b, o, s]
#   u2row[b, s*80 + k*40 + o]   = tconv2-out[b, o, 2s + k]
#   decrow[b, s*2C + k*C + c]   = decoder_out[b, 0, c, 2s + k]
# ---------------------------------------------------------------------------
def prepare_kernel_params(raw, input_dim, encoding_dim, channel_count,
                          weight_dtype=jnp.bfloat16):
    W, E, C, F = input_dim, encoding_dim, channel_count, F_CH
    W2 = W // 2
    g = lambda name: np.asarray(raw[name], np.float32)

    w1, b1 = g("conv1_w")[:, 0, :, 0], g("conv1_b")        # (40,C) [i,c]
    w2, b2 = g("conv2_w")[:, :, 0, :], g("conv2_b")        # (40,40,2) [o,i,k]
    w3, b3 = g("conv3_w")[:, :, 0, :], g("conv3_b")        # (40,40,11) [o,i,j]
    l1w, l1b = g("lin1_w"), g("lin1_b")
    l2w, l2b = g("lin2_w"), g("lin2_b")
    l3w, l3b = g("lin3_w"), g("lin3_b")
    l4w, l4b = g("lin4_w"), g("lin4_b")
    t1w, t1b = g("tconv1_w")[:, 0, :, 0], g("tconv1_b")    # (40,C) [i,c]
    t2w, t2b = g("tconv2_w")[:, :, 0, :], g("tconv2_b")    # (40,40,2) [i,o,k]
    t3w, t3b = g("tconv3_w")[:, :, 0, :], g("tconv3_b")    # (40,40,11) [i,o,j]

    # --- conv1 ∘ conv2 fold, block-diagonal over the W2 output positions ---
    A = np.einsum("ic,oik->kco", w1, w2).reshape(2 * C, F)     # [(k,c), o]
    bias12 = b2 + np.einsum("i,oik->o", b1, w2)
    BD12 = np.zeros((W * C, W2 * F), np.float32)
    for s in range(W2):
        BD12[2 * s * C:(2 * s + 2) * C, s * F:(s + 1) * F] = A
    b12 = np.tile(bias12, W2)

    # --- conv3 ∘ flatten ∘ lin1 fold (exact; no activation in between) ---
    L1 = l1w.reshape(10 * W, F, W2)                # L1[n, o, s] = lin1_w[n, o*W2 + s]
    G1 = np.zeros((W2 * F, 10 * W), np.float32)
    for sp in range(W2):
        for s in range(W2):
            j = sp - s + 5
            if 0 <= j < N_TAPS:
                G1[sp * F:(sp + 1) * F, :] += np.einsum("oi,no->in", w3[:, :, j], L1[:, :, s])
    g1b = l1b + np.einsum("o,nos->n", b3, L1)

    # --- lin2 / lin3 ---
    M2, bl2 = np.ascontiguousarray(l2w.T), l2b
    M3, bl3 = np.ascontiguousarray(l3w.T), l3b

    # --- lin4 ∘ reshape ∘ tconv3 fold (exact) ---
    L4 = l4w.reshape(F, W2, 10 * W)                # L4[i, s', n] = lin4_w[i*W2 + s', n]
    L4b = l4b.reshape(F, W2)
    G4 = np.zeros((10 * W, W2 * F), np.float32)
    g4b = np.zeros((W2 * F,), np.float32)
    for s in range(W2):
        acc_w = np.zeros((10 * W, F), np.float32)
        acc_b = np.zeros((F,), np.float32)
        for j in range(N_TAPS):
            sp = s - j + 5
            if 0 <= sp < W2:
                acc_w += np.einsum("in,io->no", L4[:, sp, :], t3w[:, :, j])
                acc_b += np.einsum("i,io->o", L4b[:, sp], t3w[:, :, j])
        G4[:, s * F:(s + 1) * F] = acc_w
        g4b[s * F:(s + 1) * F] = acc_b + t3b

    # --- tconv2, block-diagonal (stride-2 upsample -> even/odd lane blocks) ---
    Wt2 = np.transpose(t2w, (0, 2, 1)).reshape(F, 2 * F)       # [i, k*40 + o]
    BDt2 = np.zeros((W2 * F, W2 * 2 * F), np.float32)
    for s in range(W2):
        BDt2[s * F:(s + 1) * F, s * 2 * F:(s + 1) * 2 * F] = Wt2
    bt2 = np.tile(np.tile(t2b, 2), W2)

    # --- tconv1, block-diagonal back to per-position channel lanes ---
    BDt1 = np.zeros((W2 * 2 * F, W2 * 2 * C), np.float32)
    for s in range(W2):
        for k in range(2):
            BDt1[s * 2 * F + k * F:s * 2 * F + (k + 1) * F,
                 s * 2 * C + k * C:s * 2 * C + (k + 1) * C] = t1w
    bt1 = np.full((W2 * 2 * C,), t1b[0], np.float32)

    # --- pack all 7 bias rows into one (8, NMAX) f32 slab: a single DMA ---
    biases = [b12, g1b, bl2, bl3, g4b, bt2, bt1]
    nmax = max(b.shape[0] for b in biases)
    bias_slab = np.zeros((8, nmax), np.float32)
    for r, b in enumerate(biases):
        bias_slab[r, :b.shape[0]] = b

    wd = weight_dtype
    return {
        "W12": jnp.asarray(BD12, wd), "G1": jnp.asarray(G1, wd),
        "M2": jnp.asarray(M2, wd), "M3": jnp.asarray(M3, wd),
        "G4": jnp.asarray(G4, wd), "Wt2": jnp.asarray(BDt2, wd),
        "Wt1": jnp.asarray(BDt1, wd),
        "bias": jnp.asarray(bias_slab, jnp.float32),
    }


# ---------------------------------------------------------------------------
# Forward-pass builder: one jitted function, one pallas_call, batch-parallel grid.
# ---------------------------------------------------------------------------
def make_forward(input_dim, encoding_dim, channel_count, batch, block_b=None):
    W, E, C = input_dim, encoding_dim, channel_count
    W2 = W // 2
    if block_b is None:
        block_b = min(128, _round_up(batch, 8))
    b_pad = _round_up(batch, block_b)
    grid = (b_pad // block_b,)
    weight_names = ("W12", "G1", "M2", "M3", "G4", "Wt2", "Wt1")

    def const_spec(shape):
        return pl.BlockSpec(shape, lambda i: (0,) * len(shape))

    @jax.jit
    def forward(kp, x):
        # NCHW (B,1,C,W) -> (B, W*C) rows (position-major, channel-minor).
        xrow = jnp.transpose(x[:, 0], (0, 2, 1)).reshape(batch, W * C).astype(jnp.float32)
        if b_pad != batch:
            xrow = jnp.pad(xrow, ((0, b_pad - batch), (0, 0)))

        weights = [kp[n] for n in weight_names]
        in_specs = ([pl.BlockSpec((block_b, W * C), lambda i: (i, 0)),
                     const_spec(kp["bias"].shape)]
                    + [const_spec(w.shape) for w in weights])

        bott, dec = pl.pallas_call(
            _arxiv_fused_kernel,
            out_shape=(jax.ShapeDtypeStruct((b_pad, E), jnp.float32),
                       jax.ShapeDtypeStruct((b_pad, W2 * 2 * C), jnp.float32)),
            grid=grid,
            in_specs=in_specs,
            out_specs=(pl.BlockSpec((block_b, E), lambda i: (i, 0)),
                       pl.BlockSpec((block_b, W2 * 2 * C), lambda i: (i, 0))),
            compiler_params=pltpu.CompilerParams(dimension_semantics=("parallel",)),
        )(xrow, kp["bias"], *weights)

        bott = bott[:batch]
        dec = dec[:batch].reshape(batch, W2, 2, C)                 # [b, s, k, c]
        dec = jnp.transpose(dec, (0, 3, 1, 2)).reshape(batch, C, W)[:, None, :, :]
        return bott, dec

    return forward


# ---------------------------------------------------------------------------
# Pure-JAX f32 mirror of the original PyTorch graph (eval mode), for validation.
# ---------------------------------------------------------------------------
def reference_forward(raw, x, input_dim, channel_count):
    W, C = input_dim, channel_count
    W2 = W // 2
    B = x.shape[0]
    xcw = x[:, 0].astype(jnp.float32)                                       # (B, C, W)

    y1 = jnp.einsum("bcw,ic->biw", xcw, raw["conv1_w"][:, 0, :, 0]) + raw["conv1_b"][None, :, None]
    h2 = jnp.einsum("bisk,oik->bos", y1.reshape(B, F_CH, W2, 2),
                    raw["conv2_w"][:, :, 0, :]) + raw["conv2_b"][None, :, None]
    h2 = jnp.maximum(h2, 0.0)
    h2p = jnp.pad(h2, ((0, 0), (0, 0), (5, 5)))
    w3 = raw["conv3_w"][:, :, 0, :]
    h3 = raw["conv3_b"][None, :, None] + sum(
        jnp.einsum("bis,oi->bos", h2p[:, :, j:j + W2], w3[:, :, j]) for j in range(N_TAPS))
    z1 = h3.reshape(B, F_CH * W2) @ raw["lin1_w"].T + raw["lin1_b"]
    bott = z1 @ raw["lin2_w"].T + raw["lin2_b"]
    z3 = bott @ raw["lin3_w"].T + raw["lin3_b"]
    d = (z3 @ raw["lin4_w"].T + raw["lin4_b"]).reshape(B, F_CH, W2)
    dp = jnp.pad(d, ((0, 0), (0, 0), (5, 5)))
    t3w = raw["tconv3_w"][:, :, 0, :]
    ht3 = raw["tconv3_b"][None, :, None] + sum(
        jnp.einsum("bis,io->bos", dp[:, :, 10 - j:10 - j + W2], t3w[:, :, j]) for j in range(N_TAPS))
    ht3 = jnp.maximum(ht3, 0.0)
    u = jnp.einsum("bis,iok->bosk", ht3, raw["tconv2_w"][:, :, 0, :]).reshape(B, F_CH, W) \
        + raw["tconv2_b"][None, :, None]
    u = jnp.maximum(u, 0.0)
    dec = jnp.einsum("biw,ic->bcw", u, raw["tconv1_w"][:, 0, :, 0]) + raw["tconv1_b"][0]
    return bott, dec[:, None, :, :]


if __name__ == "__main__":
    input_dim, encoding_dim, channel_count, batch = 16, 8, 4, 2
    key = jax.random.PRNGKey(0)
    kx, kparam = jax.random.split(key)

    x = jax.random.normal(kx, (batch, 1, channel_count, input_dim), dtype=jnp.float32)
    raw = init_raw_params(kparam, input_dim, encoding_dim, channel_count)
    kparams = prepare_kernel_params(raw, input_dim, encoding_dim, channel_count)
    forward = make_forward(input_dim, encoding_dim, channel_count, batch)

    bottleneck, decoder_out = forward(kparams, x)
    jax.block_until_ready((bottleneck, decoder_out))

    assert bottleneck.shape == (batch, encoding_dim)
    assert decoder_out.shape == (batch, 1, channel_count, input_dim)
    assert bool(jnp.all(jnp.isfinite(bottleneck))) and bool(jnp.all(jnp.isfinite(decoder_out)))

    # Validate folded-layer math against a pure-JAX f32 mirror of the original
    # graph (loose tolerance: kernel matmul operands are bf16).
    ref_bott, ref_dec = reference_forward(raw, x, input_dim, channel_count)
    np.testing.assert_allclose(np.asarray(bottleneck), np.asarray(ref_bott), rtol=0.05, atol=5e-3)
    np.testing.assert_allclose(np.asarray(decoder_out), np.asarray(ref_dec), rtol=0.05, atol=5e-3)

    print("KERNEL_OK")
</pallas_src>

<mosaic_0001>
module attributes {stable_mosaic.version = 11 : i64} {
  func.func @_arxiv_fused_kernel(%arg0: i32, %arg1: memref<8x64xf32, #tpu.memory_space<vmem>>, %arg2: memref<8x640xf32, #tpu.memory_space<vmem>>, %arg3: memref<64x320xbf16, #tpu.memory_space<vmem>>, %arg4: memref<320x160xbf16, #tpu.memory_space<vmem>>, %arg5: memref<160x8xbf16, #tpu.memory_space<vmem>>, %arg6: memref<8x160xbf16, #tpu.memory_space<vmem>>, %arg7: memref<160x320xbf16, #tpu.memory_space<vmem>>, %arg8: memref<320x640xbf16, #tpu.memory_space<vmem>>, %arg9: memref<640x64xbf16, #tpu.memory_space<vmem>>, %arg10: memref<8x8xf32, #tpu.memory_space<vmem>>, %arg11: memref<8x64xf32, #tpu.memory_space<vmem>>) attributes {dimension_semantics = [#tpu.dimension_semantics<parallel>], iteration_bounds = array<i64: 1>, scalar_prefetch = 0 : i64, scratch_operands = 0 : i64, tpu.core_type = #tpu.core_type<tc>, window_params = [{transform_indices = @transform_0, window_bounds = array<i64: 8, 64>}, {pipeline_mode = #tpu.pipeline_mode<synchronous>, transform_indices = @transform_1, window_bounds = array<i64: 8, 640>}, {pipeline_mode = #tpu.pipeline_mode<synchronous>, transform_indices = @transform_2, window_bounds = array<i64: 64, 320>}, {pipeline_mode = #tpu.pipeline_mode<synchronous>, transform_indices = @transform_3, window_bounds = array<i64: 320, 160>}, {pipeline_mode = #tpu.pipeline_mode<synchronous>, transform_indices = @transform_4, window_bounds = array<i64: 160, 8>}, {pipeline_mode = #tpu.pipeline_mode<synchronous>, transform_indices = @transform_5, window_bounds = array<i64: 8, 160>}, {pipeline_mode = #tpu.pipeline_mode<synchronous>, transform_indices = @transform_6, window_bounds = array<i64: 160, 320>}, {pipeline_mode = #tpu.pipeline_mode<synchronous>, transform_indices = @transform_7, window_bounds = array<i64: 320, 640>}, {pipeline_mode = #tpu.pipeline_mode<synchronous>, transform_indices = @transform_8, window_bounds = array<i64: 640, 64>}, {transform_indices = @transform_9, window_bounds = array<i64: 8, 8>}, {transform_indices = @transform_10, window_bounds = array<i64: 8, 64>}]} {
    %c0 = arith.constant 0 : index
    %c0_0 = arith.constant 0 : index
    %0 = vector.load %arg1[%c0, %c0_0] : memref<8x64xf32, #tpu.memory_space<vmem>>, vector<8x64xf32>
    %1 = arith.truncf %0 : vector<8x64xf32> to vector<8x64xbf16>
    %c0_1 = arith.constant 0 : index
    %c0_2 = arith.constant 0 : index
    %2 = vector.load %arg3[%c0_1, %c0_2] : memref<64x320xbf16, #tpu.memory_space<vmem>>, vector<64x320xbf16>
    %cst = arith.constant dense<0.000000e+00> : vector<8x320xf32>
    %3 = tpu.matmul %1, %2, %cst {dimension_numbers = #tpu.dot_dimension_numbers<[1], [0], [0], [1], [0, 0, 1, 1], [], []>} : vector<8x64xbf16>, vector<64x320xbf16>, vector<8x320xf32> -> vector<8x320xf32>
    %c0_3 = arith.constant 0 : index
    %c0_4 = arith.constant 0 : index
    %4 = vector.load %arg2[%c0_3, %c0_4] : memref<8x640xf32, #tpu.memory_space<vmem>>, vector<1x320xf32>
    %5 = vector.broadcast %4 : vector<1x320xf32> to vector<8x320xf32>
    %6 = arith.addf %3, %5 : vector<8x320xf32>
    %cst_5 = arith.constant 0.000000e+00 : f32
    %7 = vector.broadcast %cst_5 : f32 to vector<8x320xf32>
    %8 = arith.maximumf %6, %7 : vector<8x320xf32>
    %9 = arith.truncf %8 : vector<8x320xf32> to vector<8x320xbf16>
    %c0_6 = arith.constant 0 : index
    %c0_7 = arith.constant 0 : index
    %10 = vector.load %arg4[%c0_6, %c0_7] : memref<320x160xbf16, #tpu.memory_space<vmem>>, vector<320x160xbf16>
    %cst_8 = arith.constant dense<0.000000e+00> : vector<8x160xf32>
    %11 = tpu.matmul %9, %10, %cst_8 {dimension_numbers = #tpu.dot_dimension_numbers<[1], [0], [0], [1], [0, 0, 1, 1], [], []>} : vector<8x320xbf16>, vector<320x160xbf16>, vector<8x160xf32> -> vector<8x160xf32>
    %c1 = arith.constant 1 : index
    %c0_9 = arith.constant 0 : index
    %12 = vector.load %arg2[%c1, %c0_9] : memref<8x640xf32, #tpu.memory_space<vmem>>, vector<1x160xf32>
    %13 = vector.broadcast %12 : vector<1x160xf32> to vector<8x160xf32>
    %14 = arith.addf %11, %13 : vector<8x160xf32>
    %15 = arith.truncf %14 : vector<8x160xf32> to vector<8x160xbf16>
    %c0_10 = arith.constant 0 : index
    %c0_11 = arith.constant 0 : index
    %16 = vector.load %arg5[%c0_10, %c0_11] : memref<160x8xbf16, #tpu.memory_space<vmem>>, vector<160x8xbf16>
    %cst_12 = arith.constant dense<0.000000e+00> : vector<8x8xf32>
    %17 = tpu.matmul %15, %16, %cst_12 {dimension_numbers = #tpu.dot_dimension_numbers<[1], [0], [0], [1], [0, 0, 1, 1], [], []>} : vector<8x160xbf16>, vector<160x8xbf16>, vector<8x8xf32> -> vector<8x8xf32>
    %c2 = arith.constant 2 : index
    %c0_13 = arith.constant 0 : index
    %18 = vector.load %arg2[%c2, %c0_13] : memref<8x640xf32, #tpu.memory_space<vmem>>, vector<1x8xf32>
    %19 = vector.broadcast %18 : vector<1x8xf32> to vector<8x8xf32>
    %20 = arith.addf %17, %19 : vector<8x8xf32>
    %c0_14 = arith.constant 0 : index
    %c0_15 = arith.constant 0 : index
    %21 = vector.load %arg10[%c0_14, %c0_15] : memref<8x8xf32, #tpu.memory_space<vmem>>, vector<8x8xf32>
    tpu.vector_store %arg10[%c0_14, %c0_15], %20 {strides = array<i32>} : memref<8x8xf32, #tpu.memory_space<vmem>>, vector<8x8xf32>,
    %22 = arith.truncf %20 : vector<8x8xf32> to vector<8x8xbf16>
    %c0_16 = arith.constant 0 : index
    %c0_17 = arith.constant 0 : index
    %23 = vector.load %arg6[%c0_16, %c0_17] : memref<8x160xbf16, #tpu.memory_space<vmem>>, vector<8x160xbf16>
    %cst_18 = arith.constant dense<0.000000e+00> : vector<8x160xf32>
    %24 = tpu.matmul %22, %23, %cst_18 {dimension_numbers = #tpu.dot_dimension_numbers<[1], [0], [0], [1], [0, 0, 1, 1], [], []>} : vector<8x8xbf16>, vector<8x160xbf16>, vector<8x160xf32> -> vector<8x160xf32>
    %c3 = arith.constant 3 : index
    %c0_19 = arith.constant 0 : index
    %25 = vector.load %arg2[%c3, %c0_19] : memref<8x640xf32, #tpu.memory_space<vmem>>, vector<1x160xf32>
    %26 = vector.broadcast %25 : vector<1x160xf32> to vector<8x160xf32>
    %27 = arith.addf %24, %26 : vector<8x160xf32>
    %28 = arith.truncf %27 : vector<8x160xf32> to vector<8x160xbf16>
    %c0_20 = arith.constant 0 : index
    %c0_21 = arith.constant 0 : index
    %29 = vector.load %arg7[%c0_20, %c0_21] : memref<160x320xbf16, #tpu.memory_space<vmem>>, vector<160x320xbf16>
    %cst_22 = arith.constant dense<0.000000e+00> : vector<8x320xf32>
    %30 = tpu.matmul %28, %29, %cst_22 {dimension_numbers = #tpu.dot_dimension_numbers<[1], [0], [0], [1], [0, 0, 1, 1], [], []>} : vector<8x160xbf16>, vector<160x320xbf16>, vector<8x320xf32> -> vector<8x320xf32>
    %c4 = arith.constant 4 : index
    %c0_23 = arith.constant 0 : index
    %31 = vector.load %arg2[%c4, %c0_23] : memref<8x640xf32, #tpu.memory_space<vmem>>, vector<1x320xf32>
    %32 = vector.broadcast %31 : vector<1x320xf32> to vector<8x320xf32>
    %33 = arith.addf %30, %32 : vector<8x320xf32>
    %cst_24 = arith.constant 0.000000e+00 : f32
    %34 = vector.broadcast %cst_24 : f32 to vector<8x320xf32>
    %35 = arith.maximumf %33, %34 : vector<8x320xf32>
    %36 = arith.truncf %35 : vector<8x320xf32> to vector<8x320xbf16>
    %c0_25 = arith.constant 0 : index
    %c0_26 = arith.constant 0 : index
    %37 = vector.load %arg8[%c0_25, %c0_26] : memref<320x640xbf16, #tpu.memory_space<vmem>>, vector<320x640xbf16>
    %cst_27 = arith.constant dense<0.000000e+00> : vector<8x640xf32>
    %38 = tpu.matmul %36, %37, %cst_27 {dimension_numbers = #tpu.dot_dimension_numbers<[1], [0], [0], [1], [0, 0, 1, 1], [], []>} : vector<8x320xbf16>, vector<320x640xbf16>, vector<8x640xf32> -> vector<8x640xf32>
    %c5 = arith.constant 5 : index
    %c0_28 = arith.constant 0 : index
    %39 = vector.load %arg2[%c5, %c0_28] : memref<8x640xf32, #tpu.memory_space<vmem>>, vector<1x640xf32>
    %40 = vector.broadcast %39 : vector<1x640xf32> to vector<8x640xf32>
    %41 = arith.addf %38, %40 : vector<8x640xf32>
    %cst_29 = arith.constant 0.000000e+00 : f32
    %42 = vector.broadcast %cst_29 : f32 to vector<8x640xf32>
    %43 = arith.maximumf %41, %42 : vector<8x640xf32>
    %44 = arith.truncf %43 : vector<8x640xf32> to vector<8x640xbf16>
    %c0_30 = arith.constant 0 : index
    %c0_31 = arith.constant 0 : index
    %45 = vector.load %arg9[%c0_30, %c0_31] : memref<640x64xbf16, #tpu.memory_space<vmem>>, vector<640x64xbf16>
    %cst_32 = arith.constant dense<0.000000e+00> : vector<8x64xf32>
    %46 = tpu.matmul %44, %45, %cst_32 {dimension_numbers = #tpu.dot_dimension_numbers<[1], [0], [0], [1], [0, 0, 1, 1], [], []>} : vector<8x640xbf16>, vector<640x64xbf16>, vector<8x64xf32> -> vector<8x64xf32>
    %c6 = arith.constant 6 : index
    %c0_33 = arith.constant 0 : index
    %47 = vector.load %arg2[%c6, %c0_33] : memref<8x640xf32, #tpu.memory_space<vmem>>, vector<1x64xf32>
    %48 = vector.broadcast %47 : vector<1x64xf32> to vector<8x64xf32>
    %49 = arith.addf %46, %48 : vector<8x64xf32>
    %c0_34 = arith.constant 0 : index
    %c0_35 = arith.constant 0 : index
    %50 = vector.load %arg11[%c0_34, %c0_35] : memref<8x64xf32, #tpu.memory_space<vmem>>, vector<8x64xf32>
    tpu.vector_store %arg11[%c0_34, %c0_35], %49 {strides = array<i32>} : memref<8x64xf32, #tpu.memory_space<vmem>>, vector<8x64xf32>,
    return
  }
  func.func @transform_0(%arg0: i32) -> (i32, i32) {
    %c0_i32 = arith.constant 0 : i32
    %c0_i32_0 = arith.constant 0 : i32
    return %arg0, %c0_i32 : i32, i32
  }
  func.func @transform_1(%arg0: i32) -> (i32, i32) {
    %c0_i32 = arith.constant 0 : i32
    %c0_i32_0 = arith.constant 0 : i32
    %c0_i32_1 = arith.constant 0 : i32
    return %c0_i32, %c0_i32_0 : i32, i32
  }
  func.func @transform_2(%arg0: i32) -> (i32, i32) {
    %c0_i32 = arith.constant 0 : i32
    %c0_i32_0 = arith.constant 0 : i32
    %c0_i32_1 = arith.constant 0 : i32
    return %c0_i32, %c0_i32_0 : i32, i32
  }
  func.func @transform_3(%arg0: i32) -> (i32, i32) {
    %c0_i32 = arith.constant 0 : i32
    %c0_i32_0 = arith.constant 0 : i32
    %c0_i32_1 = arith.constant 0 : i32
    return %c0_i32, %c0_i32_0 : i32, i32
  }
  func.func @transform_4(%arg0: i32) -> (i32, i32) {
    %c0_i32 = arith.constant 0 : i32
    %c0_i32_0 = arith.constant 0 : i32
    %c0_i32_1 = arith.constant 0 : i32
    return %c0_i32, %c0_i32_0 : i32, i32
  }
  func.func @transform_5(%arg0: i32) -> (i32, i32) {
    %c0_i32 = arith.constant 0 : i32
    %c0_i32_0 = arith.constant 0 : i32
    %c0_i32_1 = arith.constant 0 : i32
    return %c0_i32, %c0_i32_0 : i32, i32
  }
  func.func @transform_6(%arg0: i32) -> (i32, i32) {
    %c0_i32 = arith.constant 0 : i32
    %c0_i32_0 = arith.constant 0 : i32
    %c0_i32_1 = arith.constant 0 : i32
    return %c0_i32, %c0_i32_0 : i32, i32
  }
  func.func @transform_7(%arg0: i32) -> (i32, i32) {
    %c0_i32 = arith.constant 0 : i32
    %c0_i32_0 = arith.constant 0 : i32
    %c0_i32_1 = arith.constant 0 : i32
    return %c0_i32, %c0_i32_0 : i32, i32
  }
  func.func @transform_8(%arg0: i32) -> (i32, i32) {
    %c0_i32 = arith.constant 0 : i32
    %c0_i32_0 = arith.constant 0 : i32
    %c0_i32_1 = arith.constant 0 : i32
    return %c0_i32, %c0_i32_0 : i32, i32
  }
  func.func @transform_9(%arg0: i32) -> (i32, i32) {
    %c0_i32 = arith.constant 0 : i32
    %c0_i32_0 = arith.constant 0 : i32
    return %arg0, %c0_i32 : i32, i32
  }
  func.func @transform_10(%arg0: i32) -> (i32, i32) {
    %c0_i32 = arith.constant 0 : i32
    %c0_i32_0 = arith.constant 0 : i32
    return %arg0, %c0_i32 : i32, i32
  }
}

</mosaic_0001>

<llo_original>
// kernel: forward.1
$region0: #{forward.1}
  #allocation0 [shape = 'u32[]', space=smem, size = 0x4, offset = 0x4, fixed_abs, tag = 'smem constant byte address 0x4 - core index']
  #allocation1 [shape = 'u32[144,128]{1,0:T(1,128)}', space=vmem, size = 0x12000, scoped, tag = 'internal scratch']
  %s0 = inlined_call_operand.vmem [shape: f32[8,64], index: 0, kind: input, shape index: {}]
  %s1 = inlined_call_operand.vmem [shape: f32[8,640], index: 1, kind: input, shape index: {}]
  %s2 = inlined_call_operand.vmem [shape: bf16[64,320], index: 2, kind: input, shape index: {}]
  %s3 = inlined_call_operand.vmem [shape: bf16[320,160], index: 3, kind: input, shape index: {}]
  %s4 = inlined_call_operand.vmem [shape: bf16[160,8], index: 4, kind: input, shape index: {}]
  %s5 = inlined_call_operand.vmem [shape: bf16[8,160], index: 5, kind: input, shape index: {}]
  %s6 = inlined_call_operand.vmem [shape: bf16[160,320], index: 6, kind: input, shape index: {}]
  %s7 = inlined_call_operand.vmem [shape: bf16[320,640], index: 7, kind: input, shape index: {}]
  %s8 = inlined_call_operand.vmem [shape: bf16[640,64], index: 8, kind: input, shape index: {}]
  %s9 = inlined_call_operand.vmem [shape: f32[8,8], index: 9, kind: output, shape index: {0}]
  %s10 = inlined_call_operand.vmem [shape: f32[8,64], index: 10, kind: output, shape index: {1}]
  %11 = xla_tuple %s9, %s10
  %s12 = sld [smem:[#allocation0]]
  $region54: #{forward.1} parent=0
    _
  %s14 = ssub.s32 1, %s12
  %s15 = scalar_select 0, %s14, %s12
  // Predicated region
  $region2: #{forward.1} parent=0 // pred_check
    _
  $region3: #{forward.1} parent=0 // pred_check_branch
    %17 = sbr.rel (0) target = $region5
  $region4: #{forward.1} parent=0 // pred_region
    _
  $region5: #{forward.1} parent=0 // pred_fallthru
    _
  // Predicated region
  $region6: #{forward.1} parent=0 // pred_check
    _
  $region7: #{forward.1} parent=0 // pred_check_branch
    %19 = sbr.rel (0) target = $region9
  $region8: #{forward.1} parent=0 // pred_region
    _
  $region9: #{forward.1} parent=0 // pred_fallthru
    _
  // Predicated region
  $region10: #{forward.1} parent=0 // pred_check
    _
  $region11: #{forward.1} parent=0 // pred_check_branch
    %21 = sbr.rel (0) target = $region13
  $region12: #{forward.1} parent=0 // pred_region
    _
  $region13: #{forward.1} parent=0 // pred_fallthru
    _
  // Predicated region
  $region14: #{forward.1} parent=0 // pred_check
    _
  $region15: #{forward.1} parent=0 // pred_check_branch
    %23 = sbr.rel (0) target = $region17
  $region16: #{forward.1} parent=0 // pred_region
    _
  $region17: #{forward.1} parent=0 // pred_fallthru
    _
  // Predicated region
  $region18: #{forward.1} parent=0 // pred_check
    _
  $region19: #{forward.1} parent=0 // pred_check_branch
    %25 = sbr.rel (0) target = $region21
  $region20: #{forward.1} parent=0 // pred_region
    _
  $region21: #{forward.1} parent=0 // pred_fallthru
    _
  // Predicated region
  $region22: #{forward.1} parent=0 // pred_check
    _
  $region23: #{forward.1} parent=0 // pred_check_branch
    %27 = sbr.rel (0) target = $region25
  $region24: #{forward.1} parent=0 // pred_region
    _
  $region25: #{forward.1} parent=0 // pred_fallthru
    _
  // Predicated region
  $region26: #{forward.1} parent=0 // pred_check
    _
  $region27: #{forward.1} parent=0 // pred_check_branch
    %29 = sbr.rel (0) target = $region29
  $region28: #{forward.1} parent=0 // pred_region
    _
  $region29: #{forward.1} parent=0 // pred_fallthru
    _
  // Predicated region
  $region30: #{forward.1} parent=0 // pred_check
    _
  $region31: #{forward.1} parent=0 // pred_check_branch
    %31 = sbr.rel (0) target = $region33
  $region32: #{forward.1} parent=0 // pred_region
    _
  $region33: #{forward.1} parent=0 // pred_fallthru
    _
  // Predicated region
  $region34: #{forward.1} parent=0 // pred_check
    _
  $region35: #{forward.1} parent=0 // pred_check_branch
    %33 = sbr.rel (0) target = $region37
  $region36: #{forward.1} parent=0 // pred_region
    _
  $region37: #{forward.1} parent=0 // pred_fallthru
    _
  %v35 = vld [vmem:[%s0] sm:$0xff]
  %v36 = vpack.c.bf16 %v35, %v35
  %v37 = vld [vmem:[%s2] sm:$0xff]
  %v38 = vld [vmem:[%s2 + $0x8] sm:$0xf]
  %v39 = vld [vmem:[%s2 + $0xc] sm:$0xff]
  %v40 = vld [vmem:[%s2 + $0x14] sm:$0xf]
  %v41 = vld [vmem:[%s2 + $0x18] sm:$0xff]
  %v42 = vld [vmem:[%s2 + $0x20] sm:$0xf]
  %v43 = vld [vmem:[%s2 + $0x24] sm:$0xff]
  %v44 = vld [vmem:[%s2 + $0x2c] sm:$0xf]
  %v45 = vld [vmem:[%s2 + $0x30] sm:$0xff]
  %v46 = vld [vmem:[%s2 + $0x38] sm:$0xf]
  %v47 = vld [vmem:[%s2 + $0x3c] sm:$0xff]
  %v48 = vld [vmem:[%s2 + $0x44] sm:$0xf]
  %v49 = vld [vmem:[%s2 + $0x48] sm:$0xff]
  %v50 = vld [vmem:[%s2 + $0x50] sm:$0xf]
  %v51 = vld [vmem:[%s2 + $0x54] sm:$0xff]
  %v52 = vld [vmem:[%s2 + $0x5c] sm:$0xf]
  %v53 = vld [vmem:[%s1] ss:$8 sm:$0x7]
  %v55 = vlaneseq
  %v56 = vshrl.u32 %v55, 7
  %v57 = vsub.s32 0, %v56
  %v58 = vrot.slane %v53, %v57
  %v59 = vlaneseq
  %v60 = vshrl.u32 %v59, 7
  %v61 = vsub.s32 1, %v60
  %v62 = vrot.slane %v53, %v61
  %v63 = vlaneseq
  %v64 = vshrl.u32 %v63, 7
  %v65 = vsub.s32 2, %v64
  %v66 = vrot.slane %v53, %v65
  %v86 = vunpack.c.l.b16 %v37
  %v87 = vunpack.c.h.b16 %v37
  %v88 = vunpack.c.l.b16 %v38
  %v89 = vunpack.c.l.b16 %v39
  %v90 = vunpack.c.h.b16 %v39
  %v91 = vunpack.c.l.b16 %v40
  %v92 = vunpack.c.l.b16 %v41
  %v93 = vunpack.c.h.b16 %v41
  %v94 = vunpack.c.l.b16 %v42
  %v95 = vunpack.c.l.b16 %v43
  %v96 = vunpack.c.h.b16 %v43
  %v97 = vunpack.c.l.b16 %v44
  %v98 = vunpack.c.l.b16 %v45
  %v99 = vunpack.c.h.b16 %v45
  %v100 = vunpack.c.l.b16 %v46
  %v101 = vunpack.c.l.b16 %v47
  %v102 = vunpack.c.h.b16 %v47
  %v103 = vunpack.c.l.b16 %v48
  %v104 = vunpack.c.l.b16 %v49
  %v105 = vunpack.c.h.b16 %v49
  %v106 = vunpack.c.l.b16 %v50
  %v107 = vunpack.c.l.b16 %v51
  %v108 = vunpack.c.h.b16 %v51
  %v109 = vunpack.c.l.b16 %v52
  %v110 = vpack.c.b16 %v89, %v86
  %v111 = vpack.c.b16 %v90, %v87
  %v112 = vpack.c.b16 %v91, %v88
  %v113 = vpack.c.b16 %v95, %v92
  %v114 = vpack.c.b16 %v96, %v93
  %v115 = vpack.c.b16 %v97, %v94
  %v116 = vpack.c.b16 %v101, %v98
  %v117 = vpack.c.b16 %v102, %v99
  %v118 = vpack.c.b16 %v103, %v100
  %v119 = vpack.c.b16 %v107, %v104
  %v120 = vpack.c.b16 %v108, %v105
  %v121 = vpack.c.b16 %v109, %v106
  %vm134 = vcmask 523264
  %v136 = vsel %vm134, %v36, 0
  %138 = vmatprep.subr.bf16.mxu0 0
  %139 = vmatpush1.bf16.msra.mxu0 0
  %140 = vmatprep.subr.bf16.mxu0 0
  %141 = vmatpush1.bf16.msra.mxu0 0
  %142 = vmatprep.subr.bf16.mxu0 0
  %143 = vmatpush1.bf16.msra.mxu0 0
  %144 = vmatprep.subr.bf16.mxu0 0
  %145 = vmatpush1.bf16.msra.mxu0 0
  %146 = vmatprep.subr.bf16.mxu0 %v120
  %147 = vmatpush1.bf16.msra.mxu0 %v119
  %148 = vmatprep.subr.bf16.mxu0 %v117
  %149 = vmatpush1.bf16.msra.mxu0 %v116
  %150 = vmatprep.subr.bf16.mxu0 %v114
  %151 = vmatpush1.bf16.msra.mxu0 %v113
  %152 = vmatprep.subr.bf16.mxu0 %v111
  %153 = vmatpush1.bf16.msra.mxu0 %v110
  %154 = vmatprep.subr.bf16.mxu0 0
  %155 = vmatpush2.bf16.msra.mxu0 0
  %156 = vmatprep.subr.bf16.mxu0 0
  %157 = vmatpush2.bf16.msra.mxu0 0
  %158 = vmatprep.subr.bf16.mxu0 0
  %159 = vmatpush2.bf16.msra.mxu0 0
  %160 = vmatprep.subr.bf16.mxu0 0
  %161 = vmatpush2.bf16.msra.mxu0 0
  %162 = vmatprep.subr.bf16.mxu0 0
  %163 = vmatpush2.bf16.msra.mxu0 0
  %164 = vmatprep.subr.bf16.mxu0 0
  %165 = vmatpush2.bf16.msra.mxu0 0
  %166 = vmatprep.subr.bf16.mxu0 0
  %167 = vmatpush2.bf16.msra.mxu0 0
  %168 = vmatprep.subr.bf16.mxu0 0
  %169 = vmatpush2.bf16.msra.mxu0 0
  %170 = vmatprep.mubr.bf16.mxu0 0
  %171 = vmatmul.mubr.bf16.gmra.mxu0 %v136
  %v172 = vpop.f32.mrf.mxu0
  %v173 = vadd.f32 %v58, %v172
  %v174 = vpop.f32.mrf.mxu0
  %v175 = vadd.f32 %v62, %v174
  %v176 = vpop.f32.mrf.mxu0
  %v177 = vpop.f32.mrf.mxu0
  %178 = vdwg.mxu0
  %179 = vmatprep.subr.bf16.mxu0 0
  %180 = vmatpush1.bf16.msra.mxu0 0
  %181 = vmatprep.subr.bf16.mxu0 0
  %182 = vmatpush1.bf16.msra.mxu0 0
  %183 = vmatprep.subr.bf16.mxu0 0
  %184 = vmatpush1.bf16.msra.mxu0 0
  %185 = vmatprep.subr.bf16.mxu0 0
  %186 = vmatpush1.bf16.msra.mxu0 0
  %187 = vmatprep.subr.bf16.mxu0 0
  %188 = vmatpush1.bf16.msra.mxu0 %v121
  %189 = vmatprep.subr.bf16.mxu0 0
  %190 = vmatpush1.bf16.msra.mxu0 %v118
  %191 = vmatprep.subr.bf16.mxu0 0
  %192 = vmatpush1.bf16.msra.mxu0 %v115
  %193 = vmatprep.subr.bf16.mxu0 0
  %194 = vmatpush1.bf16.msra.mxu0 %v112
  %195 = vmatprep.subr.bf16.mxu0 0
  %196 = vmatpush2.bf16.msra.mxu0 0
  %197 = vmatprep.subr.bf16.mxu0 0
  %198 = vmatpush2.bf16.msra.mxu0 0
  %199 = vmatprep.subr.bf16.mxu0 0
  %200 = vmatpush2.bf16.msra.mxu0 0
  %201 = vmatprep.subr.bf16.mxu0 0
  %202 = vmatpush2.bf16.msra.mxu0 0
  %203 = vmatprep.subr.bf16.mxu0 0
  %204 = vmatpush2.bf16.msra.mxu0 0
  %205 = vmatprep.subr.bf16.mxu0 0
  %206 = vmatpush2.bf16.msra.mxu0 0
  %207 = vmatprep.subr.bf16.mxu0 0
  %208 = vmatpush2.bf16.msra.mxu0 0
  %209 = vmatprep.subr.bf16.mxu0 0
  %210 = vmatpush2.bf16.msra.mxu0 0
  %211 = vmatprep.mubr.bf16.mxu0 0
  %212 = vmatmul.mubr.bf16.gmra.mxu0 %v136
  %v213 = vpop.f32.mrf.mxu0
  %v214 = vadd.f32 %v66, %v213
  %v215 = vpop.f32.mrf.mxu0
  %v216 = vpop.f32.mrf.mxu0
  %v217 = vpop.f32.mrf.mxu0
  %218 = vdwg.mxu0
  %v219 = vmax.f32 %v173, 0.0
  %v220 = vmax.f32 %v175, 0.0
  %v221 = vmax.f32 %v214, 0.0
  %v222 = vpack.c.bf16 %v219, %v219
  %v223 = vpack.c.bf16 %v220, %v220
  %v224 = vpack.c.bf16 %v221, %v221
  %v225 = vld [vmem:[%s3] sm:$0xff]
  %v226 = vld [vmem:[%s3 + $0x8] sm:$0xff]
  %v227 = vld [vmem:[%s3 + $0x10] sm:$0xff]
  %v228 = vld [vmem:[%s3 + $0x18] sm:$0xff]
  %v229 = vld [vmem:[%s3 + $0x20] sm:$0xff]
  %v230 = vld [vmem:[%s3 + $0x28] sm:$0xff]
  %v231 = vld [vmem:[%s3 + $0x30] sm:$0xff]
  %v232 = vld [vmem:[%s3 + $0x38] sm:$0xff]
  %v233 = vld [vmem:[%s3 + $0x40] sm:$0xff]
  %v234 = vld [vmem:[%s3 + $0x48] sm:$0xff]
  %v235 = vld [vmem:[%s3 + $0x50] sm:$0xff]
  %v236 = vld [vmem:[%s3 + $0x58] sm:$0xff]
  %v237 = vld [vmem:[%s3 + $0x60] sm:$0xff]
  %v238 = vld [vmem:[%s3 + $0x68] sm:$0xff]
  %v239 = vld [vmem:[%s3 + $0x70] sm:$0xff]
  %v240 = vld [vmem:[%s3 + $0x78] sm:$0xff]
  %v241 = vld [vmem:[%s3 + $0x80] sm:$0xff]
  %v242 = vld [vmem:[%s3 + $0x88] sm:$0xff]
  %v243 = vld [vmem:[%s3 + $0x90] sm:$0xff]
  %v244 = vld [vmem:[%s3 + $0x98] sm:$0xff]
  %v245 = vld [vmem:[%s3 + $0xa0] sm:$0xff]
  %v246 = vld [vmem:[%s3 + $0xa8] sm:$0xff]
  %v247 = vld [vmem:[%s3 + $0xb0] sm:$0xff]
  %v248 = vld [vmem:[%s3 + $0xb8] sm:$0xff]
  %v249 = vld [vmem:[%s3 + $0xc0] sm:$0xff]
  %v250 = vld [vmem:[%s3 + $0xc8] sm:$0xff]
  %v251 = vld [vmem:[%s3 + $0xd0] sm:$0xff]
  %v252 = vld [vmem:[%s3 + $0xd8] sm:$0xff]
  %v253 = vld [vmem:[%s3 + $0xe0] sm:$0xff]
  %v254 = vld [vmem:[%s3 + $0xe8] sm:$0xff]
  %v255 = vld [vmem:[%s3 + $0xf0] sm:$0xff]
  %v256 = vld [vmem:[%s3 + $0xf8] sm:$0xff]
  %v257 = vld [vmem:[%s3 + $0x100] sm:$0xff]
  %v258 = vld [vmem:[%s3 + $0x108] sm:$0xff]
  %v259 = vld [vmem:[%s3 + $0x110] sm:$0xff]
  %v260 = vld [vmem:[%s3 + $0x118] sm:$0xff]
  %v261 = vld [vmem:[%s3 + $0x120] sm:$0xff]
  %v262 = vld [vmem:[%s3 + $0x128] sm:$0xff]
  %v263 = vld [vmem:[%s3 + $0x130] sm:$0xff]
  %v264 = vld [vmem:[%s3 + $0x138] sm:$0xff]
  %s265 = scalar_lea.vmem %s1, 1
  %v266 = vld [vmem:[%s265] ss:$8 sm:$0x3]
  %v268 = vlaneseq
  %v269 = vshrl.u32 %v268, 7
  %v270 = vsub.s32 0, %v269
  %v271 = vrot.slane %v266, %v270
  %v272 = vlaneseq
  %v273 = vshrl.u32 %v272, 7
  %v274 = vsub.s32 1, %v273
  %v275 = vrot.slane %v266, %v274
  %v318 = vunpack.c.l.b16 %v225
  %v319 = vunpack.c.h.b16 %v225
  %v320 = vunpack.c.l.b16 %v226
  %v321 = vunpack.c.h.b16 %v226
  %v322 = vunpack.c.l.b16 %v227
  %v323 = vunpack.c.h.b16 %v227
  %v324 = vunpack.c.l.b16 %v228
  %v325 = vunpack.c.h.b16 %v228
  %v326 = vunpack.c.l.b16 %v229
  %v327 = vunpack.c.h.b16 %v229
  %v328 = vunpack.c.l.b16 %v230
  %v329 = vunpack.c.h.b16 %v230
  %v330 = vunpack.c.l.b16 %v231
  %v331 = vunpack.c.h.b16 %v231
  %v332 = vunpack.c.l.b16 %v232
  %v333 = vunpack.c.h.b16 %v232
  %v334 = vunpack.c.l.b16 %v233
  %v335 = vunpack.c.h.b16 %v233
  %v336 = vunpack.c.l.b16 %v234
  %v337 = vunpack.c.h.b16 %v234
  %v338 = vunpack.c.l.b16 %v235
  %v339 = vunpack.c.h.b16 %v235
  %v340 = vunpack.c.l.b16 %v236
  %v341 = vunpack.c.h.b16 %v236
  %v342 = vunpack.c.l.b16 %v237
  %v343 = vunpack.c.h.b16 %v237
  %v344 = vunpack.c.l.b16 %v238
  %v345 = vunpack.c.h.b16 %v238
  %v346 = vunpack.c.l.b16 %v239
  %v347 = vunpack.c.h.b16 %v239
  %v348 = vunpack.c.l.b16 %v240
  %v349 = vunpack.c.h.b16 %v240
  %v350 = vunpack.c.l.b16 %v241
  %v351 = vunpack.c.h.b16 %v241
  %v352 = vunpack.c.l.b16 %v242
  %v353 = vunpack.c.h.b16 %v242
  %v354 = vunpack.c.l.b16 %v243
  %v355 = vunpack.c.h.b16 %v243
  %v356 = vunpack.c.l.b16 %v244
  %v357 = vunpack.c.h.b16 %v244
  %v358 = vunpack.c.l.b16 %v245
  %v359 = vunpack.c.h.b16 %v245
  %v360 = vunpack.c.l.b16 %v246
  %v361 = vunpack.c.h.b16 %v246
  %v362 = vunpack.c.l.b16 %v247
  %v363 = vunpack.c.h.b16 %v247
  %v364 = vunpack.c.l.b16 %v248
  %v365 = vunpack.c.h.b16 %v248
  %v366 = vunpack.c.l.b16 %v249
  %v367 = vunpack.c.h.b16 %v249
  %v368 = vunpack.c.l.b16 %v250
  %v369 = vunpack.c.h.b16 %v250
  %v370 = vunpack.c.l.b16 %v251
  %v371 = vunpack.c.h.b16 %v251
  %v372 = vunpack.c.l.b16 %v252
  %v373 = vunpack.c.h.b16 %v252
  %v374 = vunpack.c.l.b16 %v253
  %v375 = vunpack.c.h.b16 %v253
  %v376 = vunpack.c.l.b16 %v254
  %v377 = vunpack.c.h.b16 %v254
  %v378 = vunpack.c.l.b16 %v255
  %v379 = vunpack.c.h.b16 %v255
  %v380 = vunpack.c.l.b16 %v256
  %v381 = vunpack.c.h.b16 %v256
  %v382 = vunpack.c.l.b16 %v257
  %v383 = vunpack.c.h.b16 %v257
  %v384 = vunpack.c.l.b16 %v258
  %v385 = vunpack.c.h.b16 %v258
  %v386 = vunpack.c.l.b16 %v259
  %v387 = vunpack.c.h.b16 %v259
  %v388 = vunpack.c.l.b16 %v260
  %v389 = vunpack.c.h.b16 %v260
  %v390 = vunpack.c.l.b16 %v261
  %v391 = vunpack.c.h.b16 %v261
  %v392 = vunpack.c.l.b16 %v262
  %v393 = vunpack.c.h.b16 %v262
  %v394 = vunpack.c.l.b16 %v263
  %v395 = vunpack.c.h.b16 %v263
  %v396 = vunpack.c.l.b16 %v264
  %v397 = vunpack.c.h.b16 %v264
  %v398 = vpack.c.b16 %v320, %v318
  %v399 = vpack.c.b16 %v321, %v319
  %v400 = vpack.c.b16 %v324, %v322
  %v401 = vpack.c.b16 %v325, %v323
  %v402 = vpack.c.b16 %v328, %v326
  %v403 = vpack.c.b16 %v329, %v327
  %v404 = vpack.c.b16 %v332, %v330
  %v405 = vpack.c.b16 %v333, %v331
  %v406 = vpack.c.b16 %v336, %v334
  %v407 = vpack.c.b16 %v337, %v335
  %v408 = vpack.c.b16 %v340, %v338
  %v409 = vpack.c.b16 %v341, %v339
  %v410 = vpack.c.b16 %v344, %v342
  %v411 = vpack.c.b16 %v345, %v343
  %v412 = vpack.c.b16 %v348, %v346
  %v413 = vpack.c.b16 %v349, %v347
  %v414 = vpack.c.b16 %v352, %v350
  %v415 = vpack.c.b16 %v353, %v351
  %v416 = vpack.c.b16 %v356, %v354
  %v417 = vpack.c.b16 %v357, %v355
  %v418 = vpack.c.b16 %v360, %v358
  %v419 = vpack.c.b16 %v361, %v359
  %v420 = vpack.c.b16 %v364, %v362
  %v421 = vpack.c.b16 %v365, %v363
  %v422 = vpack.c.b16 %v368, %v366
  %v423 = vpack.c.b16 %v369, %v367
  %v424 = vpack.c.b16 %v372, %v370
  %v425 = vpack.c.b16 %v373, %v371
  %v426 = vpack.c.b16 %v376, %v374
  %v427 = vpack.c.b16 %v377, %v375
  %v428 = vpack.c.b16 %v380, %v378
  %v429 = vpack.c.b16 %v381, %v379
  %v430 = vpack.c.b16 %v384, %v382
  %v431 = vpack.c.b16 %v385, %v383
  %v432 = vpack.c.b16 %v388, %v386
  %v433 = vpack.c.b16 %v389, %v387
  %v434 = vpack.c.b16 %v392, %v390
  %v435 = vpack.c.b16 %v393, %v391
  %v436 = vpack.c.b16 %v396, %v394
  %v437 = vpack.c.b16 %v397, %v395
  %v479 = vsel %vm134, %v224, 0
  %481 = vmatprep.subr.bf16.mxu0 %v413
  %482 = vmatpush1.bf16.msra.mxu0 %v412
  %483 = vmatprep.subr.bf16.mxu0 %v411
  %484 = vmatpush1.bf16.msra.mxu0 %v410
  %485 = vmatprep.subr.bf16.mxu0 %v409
  %486 = vmatpush1.bf16.msra.mxu0 %v408
  %487 = vmatprep.subr.bf16.mxu0 %v407
  %488 = vmatpush1.bf16.msra.mxu0 %v406
  %489 = vmatprep.subr.bf16.mxu0 %v405
  %490 = vmatpush1.bf16.msra.mxu0 %v404
  %491 = vmatprep.subr.bf16.mxu0 %v403
  %492 = vmatpush1.bf16.msra.mxu0 %v402
  %493 = vmatprep.subr.bf16.mxu0 %v401
  %494 = vmatpush1.bf16.msra.mxu0 %v400
  %495 = vmatprep.subr.bf16.mxu0 %v399
  %496 = vmatpush1.bf16.msra.mxu0 %v398
  %497 = vmatprep.subr.bf16.mxu0 %v429
  %498 = vmatpush2.bf16.msra.mxu0 %v428
  %499 = vmatprep.subr.bf16.mxu0 %v427
  %500 = vmatpush2.bf16.msra.mxu0 %v426
  %501 = vmatprep.subr.bf16.mxu0 %v425
  %502 = vmatpush2.bf16.msra.mxu0 %v424
  %503 = vmatprep.subr.bf16.mxu0 %v423
  %504 = vmatpush2.bf16.msra.mxu0 %v422
  %505 = vmatprep.subr.bf16.mxu0 %v421
  %506 = vmatpush2.bf16.msra.mxu0 %v420
  %507 = vmatprep.subr.bf16.mxu0 %v419
  %508 = vmatpush2.bf16.msra.mxu0 %v418
  %509 = vmatprep.subr.bf16.mxu0 %v417
  %510 = vmatpush2.bf16.msra.mxu0 %v416
  %511 = vmatprep.subr.bf16.mxu0 %v415
  %512 = vmatpush2.bf16.msra.mxu0 %v414
  %513 = vmatprep.mubr.bf16.mxu0 %v223
  %514 = vmatmul.mubr.bf16.gmra.mxu0 %v222
  %v515 = vpop.f32.mrf.mxu0
  %v516 = vadd.f32 %v271, %v515
  %v517 = vpop.f32.mrf.mxu0
  %v518 = vadd.f32 %v275, %v517
  %v519 = vpop.f32.mrf.mxu0
  %v520 = vpop.f32.mrf.mxu0
  %521 = vdwg.mxu0
  %522 = vmatprep.subr.bf16.mxu0 0
  %523 = vmatpush1.bf16.msra.mxu0 0
  %524 = vmatprep.subr.bf16.mxu0 0
  %525 = vmatpush1.bf16.msra.mxu0 0
  %526 = vmatprep.subr.bf16.mxu0 0
  %527 = vmatpush1.bf16.msra.mxu0 0
  %528 = vmatprep.subr.bf16.mxu0 0
  %529 = vmatpush1.bf16.msra.mxu0 0
  %530 = vmatprep.subr.bf16.mxu0 %v437
  %531 = vmatpush1.bf16.msra.mxu0 %v436
  %532 = vmatprep.subr.bf16.mxu0 %v435
  %533 = vmatpush1.bf16.msra.mxu0 %v434
  %534 = vmatprep.subr.bf16.mxu0 %v433
  %535 = vmatpush1.bf16.msra.mxu0 %v432
  %536 = vmatprep.subr.bf16.mxu0 %v431
  %537 = vmatpush1.bf16.msra.mxu0 %v430
  %538 = vmatprep.subr.bf16.mxu0 0
  %539 = vmatpush2.bf16.msra.mxu0 0
  %540 = vmatprep.subr.bf16.mxu0 0
  %541 = vmatpush2.bf16.msra.mxu0 0
  %542 = vmatprep.subr.bf16.mxu0 0
  %543 = vmatpush2.bf16.msra.mxu0 0
  %544 = vmatprep.subr.bf16.mxu0 0
  %545 = vmatpush2.bf16.msra.mxu0 0
  %546 = vmatprep.subr.bf16.mxu0 0
  %547 = vmatpush2.bf16.msra.mxu0 0
  %548 = vmatprep.subr.bf16.mxu0 0
  %549 = vmatpush2.bf16.msra.mxu0 0
  %550 = vmatprep.subr.bf16.mxu0 0
  %551 = vmatpush2.bf16.msra.mxu0 0
  %552 = vmatprep.subr.bf16.mxu0 0
  %553 = vmatpush2.bf16.msra.mxu0 0
  %554 = vmatprep.mubr.bf16.mxu0 0
  %555 = vmatmul.mubr.bf16.gmra.mxu0 %v479
  %v556 = vpop.f32.mrf.mxu0
  %v557 = vadd.f32 %v516, %v556
  %v558 = vpop.f32.mrf.mxu0
  %v559 = vadd.f32 %v518, %v558
  %v560 = vpop.f32.mrf.mxu0
  %v561 = vpop.f32.mrf.mxu0
  %562 = vdwg.mxu0
  %v563 = vpack.c.bf16 %v557, %v557
  %v564 = vpack.c.bf16 %v559, %v559
  %v565 = vld [vmem:[%s4] sm:$0xf]
  %v566 = vld [vmem:[%s4 + $0x4] sm:$0xf]
  %v567 = vld [vmem:[%s4 + $0x8] sm:$0xf]
  %v568 = vld [vmem:[%s4 + $0xc] sm:$0xf]
  %v569 = vld [vmem:[%s4 + $0x10] sm:$0xf]
  %v570 = vld [vmem:[%s4 + $0x14] sm:$0xf]
  %v571 = vld [vmem:[%s4 + $0x18] sm:$0xf]
  %v572 = vld [vmem:[%s4 + $0x1c] sm:$0xf]
  %v573 = vld [vmem:[%s4 + $0x20] sm:$0xf]
  %v574 = vld [vmem:[%s4 + $0x24] sm:$0xf]
  %v575 = vld [vmem:[%s4 + $0x28] sm:$0xf]
  %v576 = vld [vmem:[%s4 + $0x2c] sm:$0xf]
  %v577 = vld [vmem:[%s4 + $0x30] sm:$0xf]
  %v578 = vld [vmem:[%s4 + $0x34] sm:$0xf]
  %v579 = vld [vmem:[%s4 + $0x38] sm:$0xf]
  %v580 = vld [vmem:[%s4 + $0x3c] sm:$0xf]
  %v581 = vld [vmem:[%s4 + $0x40] sm:$0xf]
  %v582 = vld [vmem:[%s4 + $0x44] sm:$0xf]
  %v583 = vld [vmem:[%s4 + $0x48] sm:$0xf]
  %v584 = vld [vmem:[%s4 + $0x4c] sm:$0xf]
  %v585 = vld [vmem:[%s1 + $0x2] ss:$0 sm:$0xff]
  %v606 = vunpack.c.l.b16 %v565
  %v607 = vunpack.c.l.b16 %v566
  %v608 = vunpack.c.l.b16 %v567
  %v609 = vunpack.c.l.b16 %v568
  %v610 = vunpack.c.l.b16 %v569
  %v611 = vunpack.c.l.b16 %v570
  %v612 = vunpack.c.l.b16 %v571
  %v613 = vunpack.c.l.b16 %v572
  %v614 = vunpack.c.l.b16 %v573
  %v615 = vunpack.c.l.b16 %v574
  %v616 = vunpack.c.l.b16 %v575
  %v617 = vunpack.c.l.b16 %v576
  %v618 = vunpack.c.l.b16 %v577
  %v619 = vunpack.c.l.b16 %v578
  %v620 = vunpack.c.l.b16 %v579
  %v621 = vunpack.c.l.b16 %v580
  %v622 = vunpack.c.l.b16 %v581
  %v623 = vunpack.c.l.b16 %v582
  %v624 = vunpack.c.l.b16 %v583
  %v625 = vunpack.c.l.b16 %v584
  %v626 = vpack.c.b16 %v607, %v606
  %v627 = vpack.c.b16 %v609, %v608
  %v628 = vpack.c.b16 %v611, %v610
  %v629 = vpack.c.b16 %v613, %v612
  %v630 = vpack.c.b16 %v615, %v614
  %v631 = vpack.c.b16 %v617, %v616
  %v632 = vpack.c.b16 %v619, %v618
  %v633 = vpack.c.b16 %v621, %v620
  %v634 = vpack.c.b16 %v623, %v622
  %v635 = vpack.c.b16 %v625, %v624
  %vm646 = vcmask 261120
  %v648 = vsel %vm646, %v564, 0
  %650 = vmatprep.subr.bf16.mxu0 0
  %651 = vmatpush1.bf16.msra.mxu0 %v633
  %652 = vmatprep.subr.bf16.mxu0 0
  %653 = vmatpush1.bf16.msra.mxu0 %v632
  %654 = vmatprep.subr.bf16.mxu0 0
  %655 = vmatpush1.bf16.msra.mxu0 %v631
  %656 = vmatprep.subr.bf16.mxu0 0
  %657 = vmatpush1.bf16.msra.mxu0 %v630
  %658 = vmatprep.subr.bf16.mxu0 0
  %659 = vmatpush1.bf16.msra.mxu0 %v629
  %660 = vmatprep.subr.bf16.mxu0 0
  %661 = vmatpush1.bf16.msra.mxu0 %v628
  %662 = vmatprep.subr.bf16.mxu0 0
  %663 = vmatpush1.bf16.msra.mxu0 %v627
  %664 = vmatprep.subr.bf16.mxu0 0
  %665 = vmatpush1.bf16.msra.mxu0 %v626
  %666 = vmatprep.subr.bf16.mxu0 0
  %667 = vmatpush2.bf16.msra.mxu0 0
  %668 = vmatprep.subr.bf16.mxu0 0
  %669 = vmatpush2.bf16.msra.mxu0 0
  %670 = vmatprep.subr.bf16.mxu0 0
  %671 = vmatpush2.bf16.msra.mxu0 0
  %672 = vmatprep.subr.bf16.mxu0 0
  %673 = vmatpush2.bf16.msra.mxu0 0
  %674 = vmatprep.subr.bf16.mxu0 0
  %675 = vmatpush2.bf16.msra.mxu0 0
  %676 = vmatprep.subr.bf16.mxu0 0
  %677 = vmatpush2.bf16.msra.mxu0 0
  %678 = vmatprep.subr.bf16.mxu0 0
  %679 = vmatpush2.bf16.msra.mxu0 %v635
  %680 = vmatprep.subr.bf16.mxu0 0
  %681 = vmatpush2.bf16.msra.mxu0 %v634
  %682 = vmatprep.mubr.bf16.mxu0 %v648
  %683 = vmatmul.mubr.bf16.gmra.mxu0 %v563
  %v684 = vpop.f32.mrf.mxu0
  %v685 = vadd.f32 %v585, %v684
  %v686 = vpop.f32.mrf.mxu0
  %v687 = vpop.f32.mrf.mxu0
  %v688 = vpop.f32.mrf.mxu0
  %689 = vdwg.mxu0
  %vm690 = vcmask 64512
  %691 = vst.msk [vmem:[%s9] sm:$0xff] %vm690, %v685
  %v692 = vpack.c.bf16 %v685, %v685
  %v693 = vld [vmem:[%s5] sm:$0xff]
  %s694 = scalar_lea.vmem %s1, 3
  %v695 = vld [vmem:[%s694] ss:$8 sm:$0x3]
  %v697 = vlaneseq
  %v698 = vshrl.u32 %v697, 7
  %v699 = vsub.s32 0, %v698
  %v700 = vrot.slane %v695, %v699
  %v701 = vlaneseq
  %v702 = vshrl.u32 %v701, 7
  %v703 = vsub.s32 1, %v702
  %v704 = vrot.slane %v695, %v703
  %v708 = vunpack.c.l.b16 %v693
  %v709 = vunpack.c.h.b16 %v693
  %v710 = vpack.c.b16 %v708, %v708
  %v711 = vpack.c.b16 %v709, %v709
  %v713 = vsel %vm690, %v692, 0
  %vm715 = vcmask 1043456
  %v717 = vsel %vm715, %v710, 0
  %v720 = vsel %vm715, %v711, 0
  %722 = vmatprep.subr.bf16.mxu0 0
  %723 = vmatpush1.bf16.msra.mxu0 0
  %724 = vmatprep.subr.bf16.mxu0 0
  %725 = vmatpush1.bf16.msra.mxu0 0
  %726 = vmatprep.subr.bf16.mxu0 0
  %727 = vmatpush1.bf16.msra.mxu0 0
  %728 = vmatprep.subr.bf16.mxu0 0
  %729 = vmatpush1.bf16.msra.mxu0 0
  %730 = vmatprep.subr.bf16.mxu0 0
  %731 = vmatpush1.bf16.msra.mxu0 0
  %732 = vmatprep.subr.bf16.mxu0 0
  %733 = vmatpush1.bf16.msra.mxu0 0
  %734 = vmatprep.subr.bf16.mxu0 0
  %735 = vmatpush1.bf16.msra.mxu0 0
  %736 = vmatprep.subr.bf16.mxu0 %v720
  %737 = vmatpush1.bf16.msra.mxu0 %v717
  %738 = vmatprep.subr.bf16.mxu0 0
  %739 = vmatpush2.bf16.msra.mxu0 0
  %740 = vmatprep.subr.bf16.mxu0 0
  %741 = vmatpush2.bf16.msra.mxu0 0
  %742 = vmatprep.subr.bf16.mxu0 0
  %743 = vmatpush2.bf16.msra.mxu0 0
  %744 = vmatprep.subr.bf16.mxu0 0
  %745 = vmatpush2.bf16.msra.mxu0 0
  %746 = vmatprep.subr.bf16.mxu0 0
  %747 = vmatpush2.bf16.msra.mxu0 0
  %748 = vmatprep.subr.bf16.mxu0 0
  %749 = vmatpush2.bf16.msra.mxu0 0
  %750 = vmatprep.subr.bf16.mxu0 0
  %751 = vmatpush2.bf16.msra.mxu0 0
  %752 = vmatprep.subr.bf16.mxu0 0
  %753 = vmatpush2.bf16.msra.mxu0 0
  %754 = vmatprep.mubr.bf16.mxu0 0
  %755 = vmatmul.mubr.bf16.gmra.mxu0 %v713
  %v756 = vpop.f32.mrf.mxu0
  %v757 = vadd.f32 %v700, %v756
  %v758 = vpop.f32.mrf.mxu0
  %v759 = vadd.f32 %v704, %v758
  %v760 = vpop.f32.mrf.mxu0
  %v761 = vpop.f32.mrf.mxu0
  %762 = vdwg.mxu0
  %v763 = vpack.c.bf16 %v757, %v757
  %v764 = vpack.c.bf16 %v759, %v759
  %v765 = vld [vmem:[%s6] sm:$0xff]
  %v766 = vld [vmem:[%s6 + $0x8] sm:$0xf]
  %v767 = vld [vmem:[%s6 + $0xc] sm:$0xff]
  %v768 = vld [vmem:[%s6 + $0x14] sm:$0xf]
  %v769 = vld [vmem:[%s6 + $0x18] sm:$0xff]
  %v770 = vld [vmem:[%s6 + $0x20] sm:$0xf]
  %v771 = vld [vmem:[%s6 + $0x24] sm:$0xff]
  %v772 = vld [vmem:[%s6 + $0x2c] sm:$0xf]
  %v773 = vld [vmem:[%s6 + $0x30] sm:$0xff]
  %v774 = vld [vmem:[%s6 + $0x38] sm:$0xf]
  %v775 = vld [vmem:[%s6 + $0x3c] sm:$0xff]
  %v776 = vld [vmem:[%s6 + $0x44] sm:$0xf]
  %v777 = vld [vmem:[%s6 + $0x48] sm:$0xff]
  %v778 = vld [vmem:[%s6 + $0x50] sm:$0xf]
  %v779 = vld [vmem:[%s6 + $0x54] sm:$0xff]
  %v780 = vld [vmem:[%s6 + $0x5c] sm:$0xf]
  %v781 = vld [vmem:[%s6 + $0x60] sm:$0xff]
  %v782 = vld [vmem:[%s6 + $0x68] sm:$0xf]
  %v783 = vld [vmem:[%s6 + $0x6c] sm:$0xff]
  %v784 = vld [vmem:[%s6 + $0x74] sm:$0xf]
  %v785 = vld [vmem:[%s6 + $0x78] sm:$0xff]
  %v786 = vld [vmem:[%s6 + $0x80] sm:$0xf]
  %v787 = vld [vmem:[%s6 + $0x84] sm:$0xff]
  %v788 = vld [vmem:[%s6 + $0x8c] sm:$0xf]
  %v789 = vld [vmem:[%s6 + $0x90] sm:$0xff]
  %v790 = vld [vmem:[%s6 + $0x98] sm:$0xf]
  %v791 = vld [vmem:[%s6 + $0x9c] sm:$0xff]
  %v792 = vld [vmem:[%s6 + $0xa4] sm:$0xf]
  %v793 = vld [vmem:[%s6 + $0xa8] sm:$0xff]
  %v794 = vld [vmem:[%s6 + $0xb0] sm:$0xf]
  %v795 = vld [vmem:[%s6 + $0xb4] sm:$0xff]
  %v796 = vld [vmem:[%s6 + $0xbc] sm:$0xf]
  %v797 = vld [vmem:[%s6 + $0xc0] sm:$0xff]
  %v798 = vld [vmem:[%s6 + $0xc8] sm:$0xf]
  %v799 = vld [vmem:[%s6 + $0xcc] sm:$0xff]
  %v800 = vld [vmem:[%s6 + $0xd4] sm:$0xf]
  %v801 = vld [vmem:[%s6 + $0xd8] sm:$0xff]
  %v802 = vld [vmem:[%s6 + $0xe0] sm:$0xf]
  %v803 = vld [vmem:[%s6 + $0xe4] sm:$0xff]
  %v804 = vld [vmem:[%s6 + $0xec] sm:$0xf]
  %s805 = scalar_lea.vmem %s1, 4
  %v806 = vld [vmem:[%s805] ss:$8 sm:$0x7]
  %v808 = vlaneseq
  %v809 = vshrl.u32 %v808, 7
  %v810 = vsub.s32 0, %v809
  %v811 = vrot.slane %v806, %v810
  %v812 = vlaneseq
  %v813 = vshrl.u32 %v812, 7
  %v814 = vsub.s32 1, %v813
  %v815 = vrot.slane %v806, %v814
  %v816 = vlaneseq
  %v817 = vshrl.u32 %v816, 7
  %v818 = vsub.s32 2, %v817
  %v819 = vrot.slane %v806, %v818
  %v863 = vunpack.c.l.b16 %v765
  %v864 = vunpack.c.h.b16 %v765
  %v865 = vunpack.c.l.b16 %v766
  %v866 = vunpack.c.l.b16 %v767
  %v867 = vunpack.c.h.b16 %v767
  %v868 = vunpack.c.l.b16 %v768
  %v869 = vunpack.c.l.b16 %v769
  %v870 = vunpack.c.h.b16 %v769
  %v871 = vunpack.c.l.b16 %v770
  %v872 = vunpack.c.l.b16 %v771
  %v873 = vunpack.c.h.b16 %v771
  %v874 = vunpack.c.l.b16 %v772
  %v875 = vunpack.c.l.b16 %v773
  %v876 = vunpack.c.h.b16 %v773
  %v877 = vunpack.c.l.b16 %v774
  %v878 = vunpack.c.l.b16 %v775
  %v879 = vunpack.c.h.b16 %v775
  %v880 = vunpack.c.l.b16 %v776
  %v881 = vunpack.c.l.b16 %v777
  %v882 = vunpack.c.h.b16 %v777
  %v883 = vunpack.c.l.b16 %v778
  %v884 = vunpack.c.l.b16 %v779
  %v885 = vunpack.c.h.b16 %v779
  %v886 = vunpack.c.l.b16 %v780
  %v887 = vunpack.c.l.b16 %v781
  %v888 = vunpack.c.h.b16 %v781
  %v889 = vunpack.c.l.b16 %v782
  %v890 = vunpack.c.l.b16 %v783
  %v891 = vunpack.c.h.b16 %v783
  %v892 = vunpack.c.l.b16 %v784
  %v893 = vunpack.c.l.b16 %v785
  %v894 = vunpack.c.h.b16 %v785
  %v895 = vunpack.c.l.b16 %v786
  %v896 = vunpack.c.l.b16 %v787
  %v897 = vunpack.c.h.b16 %v787
  %v898 = vunpack.c.l.b16 %v788
  %v899 = vunpack.c.l.b16 %v789
  %v900 = vunpack.c.h.b16 %v789
  %v901 = vunpack.c.l.b16 %v790
  %v902 = vunpack.c.l.b16 %v791
  %v903 = vunpack.c.h.b16 %v791
  %v904 = vunpack.c.l.b16 %v792
  %v905 = vunpack.c.l.b16 %v793
  %v906 = vunpack.c.h.b16 %v793
  %v907 = vunpack.c.l.b16 %v794
  %v908 = vunpack.c.l.b16 %v795
  %v909 = vunpack.c.h.b16 %v795
  %v910 = vunpack.c.l.b16 %v796
  %v911 = vunpack.c.l.b16 %v797
  %v912 = vunpack.c.h.b16 %v797
  %v913 = vunpack.c.l.b16 %v798
  %v914 = vunpack.c.l.b16 %v799
  %v915 = vunpack.c.h.b16 %v799
  %v916 = vunpack.c.l.b16 %v800
  %v917 = vunpack.c.l.b16 %v801
  %v918 = vunpack.c.h.b16 %v801
  %v919 = vunpack.c.l.b16 %v802
  %v920 = vunpack.c.l.b16 %v803
  %v921 = vunpack.c.h.b16 %v803
  %v922 = vunpack.c.l.b16 %v804
  %v923 = vpack.c.b16 %v866, %v863
  %v924 = vpack.c.b16 %v867, %v864
  %v925 = vpack.c.b16 %v868, %v865
  %v926 = vpack.c.b16 %v872, %v869
  %v927 = vpack.c.b16 %v873, %v870
  %v928 = vpack.c.b16 %v874, %v871
  %v929 = vpack.c.b16 %v878, %v875
  %v930 = vpack.c.b16 %v879, %v876
  %v931 = vpack.c.b16 %v880, %v877
  %v932 = vpack.c.b16 %v884, %v881
  %v933 = vpack.c.b16 %v885, %v882
  %v934 = vpack.c.b16 %v886, %v883
  %v935 = vpack.c.b16 %v890, %v887
  %v936 = vpack.c.b16 %v891, %v888
  %v937 = vpack.c.b16 %v892, %v889
  %v938 = vpack.c.b16 %v896, %v893
  %v939 = vpack.c.b16 %v897, %v894
  %v940 = vpack.c.b16 %v898, %v895
  %v941 = vpack.c.b16 %v902, %v899
  %v942 = vpack.c.b16 %v903, %v900
  %v943 = vpack.c.b16 %v904, %v901
  %v944 = vpack.c.b16 %v908, %v905
  %v945 = vpack.c.b16 %v909, %v906
  %v946 = vpack.c.b16 %v910, %v907
  %v947 = vpack.c.b16 %v914, %v911
  %v948 = vpack.c.b16 %v915, %v912
  %v949 = vpack.c.b16 %v916, %v913
  %v950 = vpack.c.b16 %v920, %v917
  %v951 = vpack.c.b16 %v921, %v918
  %v952 = vpack.c.b16 %v922, %v919
  %v984 = vsel %vm646, %v764, 0
  %986 = vmatprep.subr.bf16.mxu0 %v945
  %987 = vmatpush1.bf16.msra.mxu0 %v944
  %988 = vmatprep.subr.bf16.mxu0 %v942
  %989 = vmatpush1.bf16.msra.mxu0 %v941
  %990 = vmatprep.subr.bf16.mxu0 %v939
  %991 = vmatpush1.bf16.msra.mxu0 %v938
  %992 = vmatprep.subr.bf16.mxu0 %v936
  %993 = vmatpush1.bf16.msra.mxu0 %v935
  %994 = vmatprep.subr.bf16.mxu0 %v933
  %995 = vmatpush1.bf16.msra.mxu0 %v932
  %996 = vmatprep.subr.bf16.mxu0 %v930
  %997 = vmatpush1.bf16.msra.mxu0 %v929
  %998 = vmatprep.subr.bf16.mxu0 %v927
  %999 = vmatpush1.bf16.msra.mxu0 %v926
  %1000 = vmatprep.subr.bf16.mxu0 %v924
  %1001 = vmatpush1.bf16.msra.mxu0 %v923
  %1002 = vmatprep.subr.bf16.mxu0 0
  %1003 = vmatpush2.bf16.msra.mxu0 0
  %1004 = vmatprep.subr.bf16.mxu0 0
  %1005 = vmatpush2.bf16.msra.mxu0 0
  %1006 = vmatprep.subr.bf16.mxu0 0
  %1007 = vmatpush2.bf16.msra.mxu0 0
  %1008 = vmatprep.subr.bf16.mxu0 0
  %1009 = vmatpush2.bf16.msra.mxu0 0
  %1010 = vmatprep.subr.bf16.mxu0 0
  %1011 = vmatpush2.bf16.msra.mxu0 0
  %1012 = vmatprep.subr.bf16.mxu0 0
  %1013 = vmatpush2.bf16.msra.mxu0 0
  %1014 = vmatprep.subr.bf16.mxu0 %v951
  %1015 = vmatpush2.bf16.msra.mxu0 %v950
  %1016 = vmatprep.subr.bf16.mxu0 %v948
  %1017 = vmatpush2.bf16.msra.mxu0 %v947
  %1018 = vmatprep.mubr.bf16.mxu0 %v984
  %1019 = vmatmul.mubr.bf16.gmra.mxu0 %v763
  %v1020 = vpop.f32.mrf.mxu0
  %v1021 = vadd.f32 %v811, %v1020
  %v1022 = vpop.f32.mrf.mxu0
  %v1023 = vadd.f32 %v815, %v1022
  %v1024 = vpop.f32.mrf.mxu0
  %v1025 = vpop.f32.mrf.mxu0
  %1026 = vdwg.mxu0
  %1027 = vmatprep.subr.bf16.mxu0 0
  %1028 = vmatpush1.bf16.msra.mxu0 %v946
  %1029 = vmatprep.subr.bf16.mxu0 0
  %1030 = vmatpush1.bf16.msra.mxu0 %v943
  %1031 = vmatprep.subr.bf16.mxu0 0
  %1032 = vmatpush1.bf16.msra.mxu0 %v940
  %1033 = vmatprep.subr.bf16.mxu0 0
  %1034 = vmatpush1.bf16.msra.mxu0 %v937
  %1035 = vmatprep.subr.bf16.mxu0 0
  %1036 = vmatpush1.bf16.msra.mxu0 %v934
  %1037 = vmatprep.subr.bf16.mxu0 0
  %1038 = vmatpush1.bf16.msra.mxu0 %v931
  %1039 = vmatprep.subr.bf16.mxu0 0
  %1040 = vmatpush1.bf16.msra.mxu0 %v928
  %1041 = vmatprep.subr.bf16.mxu0 0
  %1042 = vmatpush1.bf16.msra.mxu0 %v925
  %1043 = vmatprep.subr.bf16.mxu0 0
  %1044 = vmatpush2.bf16.msra.mxu0 0
  %1045 = vmatprep.subr.bf16.mxu0 0
  %1046 = vmatpush2.bf16.msra.mxu0 0
  %1047 = vmatprep.subr.bf16.mxu0 0
  %1048 = vmatpush2.bf16.msra.mxu0 0
  %1049 = vmatprep.subr.bf16.mxu0 0
  %1050 = vmatpush2.bf16.msra.mxu0 0
  %1051 = vmatprep.subr.bf16.mxu0 0
  %1052 = vmatpush2.bf16.msra.mxu0 0
  %1053 = vmatprep.subr.bf16.mxu0 0
  %1054 = vmatpush2.bf16.msra.mxu0 0
  %1055 = vmatprep.subr.bf16.mxu0 0
  %1056 = vmatpush2.bf16.msra.mxu0 %v952
  %1057 = vmatprep.subr.bf16.mxu0 0
  %1058 = vmatpush2.bf16.msra.mxu0 %v949
  %1059 = vmatprep.mubr.bf16.mxu0 %v984
  %1060 = vmatmul.mubr.bf16.gmra.mxu0 %v763
  %v1061 = vpop.f32.mrf.mxu0
  %v1062 = vadd.f32 %v819, %v1061
  %v1063 = vpop.f32.mrf.mxu0
  %v1064 = vpop.f32.mrf.mxu0
  %v1065 = vpop.f32.mrf.mxu0
  %1066 = vdwg.mxu0
  %v1067 = vmax.f32 %v1021, 0.0
  %v1068 = vmax.f32 %v1023, 0.0
  %v1069 = vmax.f32 %v1062, 0.0
  %v1070 = vpack.c.bf16 %v1067, %v1067
  %v1071 = vpack.c.bf16 %v1068, %v1068
  %v1072 = vpack.c.bf16 %v1069, %v1069
  %v1073 = vld [vmem:[%s7] sm:$0xff]
  %v1074 = vld [vmem:[%s7 + $0x8] sm:$0xff]
  %v1075 = vld [vmem:[%s7 + $0x10] sm:$0xf]
  %v1076 = vld [vmem:[%s7 + $0x14] sm:$0xff]
  %v1077 = vld [vmem:[%s7 + $0x1c] sm:$0xff]
  %v1078 = vld [vmem:[%s7 + $0x24] sm:$0xf]
  %v1079 = vld [vmem:[%s7 + $0x28] sm:$0xff]
  %v1080 = vld [vmem:[%s7 + $0x30] sm:$0xff]
  %v1081 = vld [vmem:[%s7 + $0x38] sm:$0xf]
  %v1082 = vld [vmem:[%s7 + $0x3c] sm:$0xff]
  %v1083 = vld [vmem:[%s7 + $0x44] sm:$0xff]
  %v1084 = vld [vmem:[%s7 + $0x4c] sm:$0xf]
  %v1085 = vld [vmem:[%s7 + $0x50] sm:$0xff]
  %v1086 = vld [vmem:[%s7 + $0x58] sm:$0xff]
  %v1087 = vld [vmem:[%s7 + $0x60] sm:$0xf]
  %v1088 = vld [vmem:[%s7 + $0x64] sm:$0xff]
  %v1089 = vld [vmem:[%s7 + $0x6c] sm:$0xff]
  %v1090 = vld [vmem:[%s7 + $0x74] sm:$0xf]
  %v1091 = vld [vmem:[%s7 + $0x78] sm:$0xff]
  %v1092 = vld [vmem:[%s7 + $0x80] sm:$0xff]
  %v1093 = vld [vmem:[%s7 + $0x88] sm:$0xf]
  %v1094 = vld [vmem:[%s7 + $0x8c] sm:$0xff]
  %v1095 = vld [vmem:[%s7 + $0x94] sm:$0xff]
  %v1096 = vld [vmem:[%s7 + $0x9c] sm:$0xf]
  %v1097 = vld [vmem:[%s7 + $0xa0] sm:$0xff]
  %v1098 = vld [vmem:[%s7 + $0xa8] sm:$0xff]
  %v1099 = vld [vmem:[%s7 + $0xb0] sm:$0xf]
  %v1100 = vld [vmem:[%s7 + $0xb4] sm:$0xff]
  %v1101 = vld [vmem:[%s7 + $0xbc] sm:$0xff]
  %v1102 = vld [vmem:[%s7 + $0xc4] sm:$0xf]
  %v1103 = vld [vmem:[%s7 + $0xc8] sm:$0xff]
  %v1104 = vld [vmem:[%s7 + $0xd0] sm:$0xff]
  %v1105 = vld [vmem:[%s7 + $0xd8] sm:$0xf]
  %v1106 = vld [vmem:[%s7 + $0xdc] sm:$0xff]
  %v1107 = vld [vmem:[%s7 + $0xe4] sm:$0xff]
  %v1108 = vld [vmem:[%s7 + $0xec] sm:$0xf]
  %v1109 = vld [vmem:[%s7 + $0xf0] sm:$0xff]
  %v1110 = vld [vmem:[%s7 + $0xf8] sm:$0xff]
  %v1111 = vld [vmem:[%s7 + $0x100] sm:$0xf]
  %v1112 = vld [vmem:[%s7 + $0x104] sm:$0xff]
  %v1113 = vld [vmem:[%s7 + $0x10c] sm:$0xff]
  %v1114 = vld [vmem:[%s7 + $0x114] sm:$0xf]
  %v1115 = vld [vmem:[%s7 + $0x118] sm:$0xff]
  %v1116 = vld [vmem:[%s7 + $0x120] sm:$0xff]
  %v1117 = vld [vmem:[%s7 + $0x128] sm:$0xf]
  %v1118 = vld [vmem:[%s7 + $0x12c] sm:$0xff]
  %v1119 = vld [vmem:[%s7 + $0x134] sm:$0xff]
  %v1120 = vld [vmem:[%s7 + $0x13c] sm:$0xf]
  %v1121 = vld [vmem:[%s7 + $0x140] sm:$0xff]
  %v1122 = vld [vmem:[%s7 + $0x148] sm:$0xff]
  %v1123 = vld [vmem:[%s7 + $0x150] sm:$0xf]
  %v1124 = vld [vmem:[%s7 + $0x154] sm:$0xff]
  %v1125 = vld [vmem:[%s7 + $0x15c] sm:$0xff]
  %v1126 = vld [vmem:[%s7 + $0x164] sm:$0xf]
  %v1127 = vld [vmem:[%s7 + $0x168] sm:$0xff]
  %v1128 = vld [vmem:[%s7 + $0x170] sm:$0xff]
  %v1129 = vld [vmem:[%s7 + $0x178] sm:$0xf]
  %v1130 = vld [vmem:[%s7 + $0x17c] sm:$0xff]
  %v1131 = vld [vmem:[%s7 + $0x184] sm:$0xff]
  %v1132 = vld [vmem:[%s7 + $0x18c] sm:$0xf]
  %v1133 = vld [vmem:[%s7 + $0x190] sm:$0xff]
  %v1134 = vld [vmem:[%s7 + $0x198] sm:$0xff]
  %v1135 = vld [vmem:[%s7 + $0x1a0] sm:$0xf]
  %v1136 = vld [vmem:[%s7 + $0x1a4] sm:$0xff]
  %v1137 = vld [vmem:[%s7 + $0x1ac] sm:$0xff]
  %v1138 = vld [vmem:[%s7 + $0x1b4] sm:$0xf]
  %v1139 = vld [vmem:[%s7 + $0x1b8] sm:$0xff]
  %v1140 = vld [vmem:[%s7 + $0x1c0] sm:$0xff]
  %v1141 = vld [vmem:[%s7 + $0x1c8] sm:$0xf]
  %v1142 = vld [vmem:[%s7 + $0x1cc] sm:$0xff]
  %v1143 = vld [vmem:[%s7 + $0x1d4] sm:$0xff]
  %v1144 = vld [vmem:[%s7 + $0x1dc] sm:$0xf]
  %v1145 = vld [vmem:[%s7 + $0x1e0] sm:$0xff]
  %v1146 = vld [vmem:[%s7 + $0x1e8] sm:$0xff]
  %v1147 = vld [vmem:[%s7 + $0x1f0] sm:$0xf]
  %v1148 = vld [vmem:[%s7 + $0x1f4] sm:$0xff]
  %v1149 = vld [vmem:[%s7 + $0x1fc] sm:$0xff]
  %v1150 = vld [vmem:[%s7 + $0x204] sm:$0xf]
  %v1151 = vld [vmem:[%s7 + $0x208] sm:$0xff]
  %v1152 = vld [vmem:[%s7 + $0x210] sm:$0xff]
  %v1153 = vld [vmem:[%s7 + $0x218] sm:$0xf]
  %v1154 = vld [vmem:[%s7 + $0x21c] sm:$0xff]
  %v1155 = vld [vmem:[%s7 + $0x224] sm:$0xff]
  %v1156 = vld [vmem:[%s7 + $0x22c] sm:$0xf]
  %v1157 = vld [vmem:[%s7 + $0x230] sm:$0xff]
  %v1158 = vld [vmem:[%s7 + $0x238] sm:$0xff]
  %v1159 = vld [vmem:[%s7 + $0x240] sm:$0xf]
  %v1160 = vld [vmem:[%s7 + $0x244] sm:$0xff]
  %v1161 = vld [vmem:[%s7 + $0x24c] sm:$0xff]
  %v1162 = vld [vmem:[%s7 + $0x254] sm:$0xf]
  %v1163 = vld [vmem:[%s7 + $0x258] sm:$0xff]
  %v1164 = vld [vmem:[%s7 + $0x260] sm:$0xff]
  %v1165 = vld [vmem:[%s7 + $0x268] sm:$0xf]
  %v1166 = vld [vmem:[%s7 + $0x26c] sm:$0xff]
  %v1167 = vld [vmem:[%s7 + $0x274] sm:$0xff]
  %v1168 = vld [vmem:[%s7 + $0x27c] sm:$0xf]
  %v1169 = vld [vmem:[%s7 + $0x280] sm:$0xff]
  %v1170 = vld [vmem:[%s7 + $0x288] sm:$0xff]
  %v1171 = vld [vmem:[%s7 + $0x290] sm:$0xf]
  %v1172 = vld [vmem:[%s7 + $0x294] sm:$0xff]
  %v1173 = vld [vmem:[%s7 + $0x29c] sm:$0xff]
  %v1174 = vld [vmem:[%s7 + $0x2a4] sm:$0xf]
  %v1175 = vld [vmem:[%s7 + $0x2a8] sm:$0xff]
  %v1176 = vld [vmem:[%s7 + $0x2b0] sm:$0xff]
  %v1177 = vld [vmem:[%s7 + $0x2b8] sm:$0xf]
  %v1178 = vld [vmem:[%s7 + $0x2bc] sm:$0xff]
  %v1179 = vld [vmem:[%s7 + $0x2c4] sm:$0xff]
  %v1180 = vld [vmem:[%s7 + $0x2cc] sm:$0xf]
  %v1181 = vld [vmem:[%s7 + $0x2d0] sm:$0xff]
  %v1182 = vld [vmem:[%s7 + $0x2d8] sm:$0xff]
  %v1183 = vld [vmem:[%s7 + $0x2e0] sm:$0xf]
  %v1184 = vld [vmem:[%s7 + $0x2e4] sm:$0xff]
  %v1185 = vld [vmem:[%s7 + $0x2ec] sm:$0xff]
  %v1186 = vld [vmem:[%s7 + $0x2f4] sm:$0xf]
  %v1187 = vld [vmem:[%s7 + $0x2f8] sm:$0xff]
  %v1188 = vld [vmem:[%s7 + $0x300] sm:$0xff]
  %v1189 = vld [vmem:[%s7 + $0x308] sm:$0xf]
  %v1190 = vld [vmem:[%s7 + $0x30c] sm:$0xff]
  %v1191 = vld [vmem:[%s7 + $0x314] sm:$0xff]
  %v1192 = vld [vmem:[%s7 + $0x31c] sm:$0xf]
  %s1193 = scalar_lea.vmem %s1, 5
  %v1194 = vld [vmem:[%s1193] ss:$8 sm:$0xf]
  %v1195 = vld [vmem:[%s1193] ss:$8 sm:$0x10]
  %v1196 = vor.u32 %v1194, %v1195
  %v1198 = vlaneseq
  %v1199 = vshrl.u32 %v1198, 7
  %v1200 = vsub.s32 0, %v1199
  %v1201 = vrot.slane %v1196, %v1200
  %v1202 = vlaneseq
  %v1203 = vshrl.u32 %v1202, 7
  %v1204 = vsub.s32 1, %v1203
  %v1205 = vrot.slane %v1196, %v1204
  %v1206 = vlaneseq
  %v1207 = vshrl.u32 %v1206, 7
  %v1208 = vsub.s32 2, %v1207
  %v1209 = vrot.slane %v1196, %v1208
  %v1210 = vlaneseq
  %v1211 = vshrl.u32 %v1210, 7
  %v1212 = vsub.s32 3, %v1211
  %v1213 = vrot.slane %v1196, %v1212
  %v1214 = vlaneseq
  %v1215 = vshrl.u32 %v1214, 7
  %v1216 = vsub.s32 4, %v1215
  %v1217 = vrot.slane %v1196, %v1216
  %v1343 = vunpack.c.l.b16 %v1073
  %v1344 = vunpack.c.h.b16 %v1073
  %v1345 = vunpack.c.l.b16 %v1074
  %v1346 = vunpack.c.h.b16 %v1074
  %v1347 = vunpack.c.l.b16 %v1075
  %v1348 = vunpack.c.l.b16 %v1076
  %v1349 = vunpack.c.h.b16 %v1076
  %v1350 = vunpack.c.l.b16 %v1077
  %v1351 = vunpack.c.h.b16 %v1077
  %v1352 = vunpack.c.l.b16 %v1078
  %v1353 = vunpack.c.l.b16 %v1079
  %v1354 = vunpack.c.h.b16 %v1079
  %v1355 = vunpack.c.l.b16 %v1080
  %v1356 = vunpack.c.h.b16 %v1080
  %v1357 = vunpack.c.l.b16 %v1081
  %v1358 = vunpack.c.l.b16 %v1082
  %v1359 = vunpack.c.h.b16 %v1082
  %v1360 = vunpack.c.l.b16 %v1083
  %v1361 = vunpack.c.h.b16 %v1083
  %v1362 = vunpack.c.l.b16 %v1084
  %v1363 = vunpack.c.l.b16 %v1085
  %v1364 = vunpack.c.h.b16 %v1085
  %v1365 = vunpack.c.l.b16 %v1086
  %v1366 = vunpack.c.h.b16 %v1086
  %v1367 = vunpack.c.l.b16 %v1087
  %v1368 = vunpack.c.l.b16 %v1088
  %v1369 = vunpack.c.h.b16 %v1088
  %v1370 = vunpack.c.l.b16 %v1089
  %v1371 = vunpack.c.h.b16 %v1089
  %v1372 = vunpack.c.l.b16 %v1090
  %v1373 = vunpack.c.l.b16 %v1091
  %v1374 = vunpack.c.h.b16 %v1091
  %v1375 = vunpack.c.l.b16 %v1092
  %v1376 = vunpack.c.h.b16 %v1092
  %v1377 = vunpack.c.l.b16 %v1093
  %v1378 = vunpack.c.l.b16 %v1094
  %v1379 = vunpack.c.h.b16 %v1094
  %v1380 = vunpack.c.l.b16 %v1095
  %v1381 = vunpack.c.h.b16 %v1095
  %v1382 = vunpack.c.l.b16 %v1096
  %v1383 = vunpack.c.l.b16 %v1097
  %v1384 = vunpack.c.h.b16 %v1097
  %v1385 = vunpack.c.l.b16 %v1098
  %v1386 = vunpack.c.h.b16 %v1098
  %v1387 = vunpack.c.l.b16 %v1099
  %v1388 = vunpack.c.l.b16 %v1100
  %v1389 = vunpack.c.h.b16 %v1100
  %v1390 = vunpack.c.l.b16 %v1101
  %v1391 = vunpack.c.h.b16 %v1101
  %v1392 = vunpack.c.l.b16 %v1102
  %v1393 = vunpack.c.l.b16 %v1103
  %v1394 = vunpack.c.h.b16 %v1103
  %v1395 = vunpack.c.l.b16 %v1104
  %v1396 = vunpack.c.h.b16 %v1104
  %v1397 = vunpack.c.l.b16 %v1105
  %v1398 = vunpack.c.l.b16 %v1106
  %v1399 = vunpack.c.h.b16 %v1106
  %v1400 = vunpack.c.l.b16 %v1107
  %v1401 = vunpack.c.h.b16 %v1107
  %v1402 = vunpack.c.l.b16 %v1108
  %v1403 = vunpack.c.l.b16 %v1109
  %v1404 = vunpack.c.h.b16 %v1109
  %v1405 = vunpack.c.l.b16 %v1110
  %v1406 = vunpack.c.h.b16 %v1110
  %v1407 = vunpack.c.l.b16 %v1111
  %v1408 = vunpack.c.l.b16 %v1112
  %v1409 = vunpack.c.h.b16 %v1112
  %v1410 = vunpack.c.l.b16 %v1113
  %v1411 = vunpack.c.h.b16 %v1113
  %v1412 = vunpack.c.l.b16 %v1114
  %v1413 = vunpack.c.l.b16 %v1115
  %v1414 = vunpack.c.h.b16 %v1115
  %v1415 = vunpack.c.l.b16 %v1116
  %v1416 = vunpack.c.h.b16 %v1116
  %v1417 = vunpack.c.l.b16 %v1117
  %v1418 = vunpack.c.l.b16 %v1118
  %v1419 = vunpack.c.h.b16 %v1118
  %v1420 = vunpack.c.l.b16 %v1119
  %v1421 = vunpack.c.h.b16 %v1119
  %v1422 = vunpack.c.l.b16 %v1120
  %v1423 = vunpack.c.l.b16 %v1121
  %v1424 = vunpack.c.h.b16 %v1121
  %v1425 = vunpack.c.l.b16 %v1122
  %v1426 = vunpack.c.h.b16 %v1122
  %v1427 = vunpack.c.l.b16 %v1123
  %v1428 = vunpack.c.l.b16 %v1124
  %v1429 = vunpack.c.h.b16 %v1124
  %v1430 = vunpack.c.l.b16 %v1125
  %v1431 = vunpack.c.h.b16 %v1125
  %v1432 = vunpack.c.l.b16 %v1126
  %v1433 = vunpack.c.l.b16 %v1127
  %v1434 = vunpack.c.h.b16 %v1127
  %v1435 = vunpack.c.l.b16 %v1128
  %v1436 = vunpack.c.h.b16 %v1128
  %v1437 = vunpack.c.l.b16 %v1129
  %v1438 = vunpack.c.l.b16 %v1130
  %v1439 = vunpack.c.h.b16 %v1130
  %v1440 = vunpack.c.l.b16 %v1131
  %v1441 = vunpack.c.h.b16 %v1131
  %v1442 = vunpack.c.l.b16 %v1132
  %v1443 = vunpack.c.l.b16 %v1133
  %v1444 = vunpack.c.h.b16 %v1133
  %v1445 = vunpack.c.l.b16 %v1134
  %v1446 = vunpack.c.h.b16 %v1134
  %v1447 = vunpack.c.l.b16 %v1135
  %v1448 = vunpack.c.l.b16 %v1136
  %v1449 = vunpack.c.h.b16 %v1136
  %v1450 = vunpack.c.l.b16 %v1137
  %v1451 = vunpack.c.h.b16 %v1137
  %v1452 = vunpack.c.l.b16 %v1138
  %v1453 = vunpack.c.l.b16 %v1139
  %v1454 = vunpack.c.h.b16 %v1139
  %v1455 = vunpack.c.l.b16 %v1140
  %v1456 = vunpack.c.h.b16 %v1140
  %v1457 = vunpack.c.l.b16 %v1141
  %v1458 = vunpack.c.l.b16 %v1142
  %v1459 = vunpack.c.h.b16 %v1142
  %v1460 = vunpack.c.l.b16 %v1143
  %v1461 = vunpack.c.h.b16 %v1143
  %v1462 = vunpack.c.l.b16 %v1144
  %v1463 = vunpack.c.l.b16 %v1145
  %v1464 = vunpack.c.h.b16 %v1145
  %v1465 = vunpack.c.l.b16 %v1146
  %v1466 = vunpack.c.h.b16 %v1146
  %v1467 = vunpack.c.l.b16 %v1147
  %v1468 = vunpack.c.l.b16 %v1148
  %v1469 = vunpack.c.h.b16 %v1148
  %v1470 = vunpack.c.l.b16 %v1149
  %v1471 = vunpack.c.h.b16 %v1149
  %v1472 = vunpack.c.l.b16 %v1150
  %v1473 = vunpack.c.l.b16 %v1151
  %v1474 = vunpack.c.h.b16 %v1151
  %v1475 = vunpack.c.l.b16 %v1152
  %v1476 = vunpack.c.h.b16 %v1152
  %v1477 = vunpack.c.l.b16 %v1153
  %v1478 = vunpack.c.l.b16 %v1154
  %v1479 = vunpack.c.h.b16 %v1154
  %v1480 = vunpack.c.l.b16 %v1155
  %v1481 = vunpack.c.h.b16 %v1155
  %v1482 = vunpack.c.l.b16 %v1156
  %v1483 = vunpack.c.l.b16 %v1157
  %v1484 = vunpack.c.h.b16 %v1157
  %v1485 = vunpack.c.l.b16 %v1158
  %v1486 = vunpack.c.h.b16 %v1158
  %v1487 = vunpack.c.l.b16 %v1159
  %v1488 = vunpack.c.l.b16 %v1160
  %v1489 = vunpack.c.h.b16 %v1160
  %v1490 = vunpack.c.l.b16 %v1161
  %v1491 = vunpack.c.h.b16 %v1161
  %v1492 = vunpack.c.l.b16 %v1162
  %v1493 = vunpack.c.l.b16 %v1163
  %v1494 = vunpack.c.h.b16 %v1163
  %v1495 = vunpack.c.l.b16 %v1164
  %v1496 = vunpack.c.h.b16 %v1164
  %v1497 = vunpack.c.l.b16 %v1165
  %v1498 = vunpack.c.l.b16 %v1166
  %v1499 = vunpack.c.h.b16 %v1166
  %v1500 = vunpack.c.l.b16 %v1167
  %v1501 = vunpack.c.h.b16 %v1167
  %v1502 = vunpack.c.l.b16 %v1168
  %v1503 = vunpack.c.l.b16 %v1169
  %v1504 = vunpack.c.h.b16 %v1169
  %v1505 = vunpack.c.l.b16 %v1170
  %v1506 = vunpack.c.h.b16 %v1170
  %v1507 = vunpack.c.l.b16 %v1171
  %v1508 = vunpack.c.l.b16 %v1172
  %v1509 = vunpack.c.h.b16 %v1172
  %v1510 = vunpack.c.l.b16 %v1173
  %v1511 = vunpack.c.h.b16 %v1173
  %v1512 = vunpack.c.l.b16 %v1174
  %v1513 = vunpack.c.l.b16 %v1175
  %v1514 = vunpack.c.h.b16 %v1175
  %v1515 = vunpack.c.l.b16 %v1176
  %v1516 = vunpack.c.h.b16 %v1176
  %v1517 = vunpack.c.l.b16 %v1177
  %v1518 = vunpack.c.l.b16 %v1178
  %v1519 = vunpack.c.h.b16 %v1178
  %v1520 = vunpack.c.l.b16 %v1179
  %v1521 = vunpack.c.h.b16 %v1179
  %v1522 = vunpack.c.l.b16 %v1180
  %v1523 = vunpack.c.l.b16 %v1181
  %v1524 = vunpack.c.h.b16 %v1181
  %v1525 = vunpack.c.l.b16 %v1182
  %v1526 = vunpack.c.h.b16 %v1182
  %v1527 = vunpack.c.l.b16 %v1183
  %v1528 = vunpack.c.l.b16 %v1184
  %v1529 = vunpack.c.h.b16 %v1184
  %v1530 = vunpack.c.l.b16 %v1185
  %v1531 = vunpack.c.h.b16 %v1185
  %v1532 = vunpack.c.l.b16 %v1186
  %v1533 = vunpack.c.l.b16 %v1187
  %v1534 = vunpack.c.h.b16 %v1187
  %v1535 = vunpack.c.l.b16 %v1188
  %v1536 = vunpack.c.h.b16 %v1188
  %v1537 = vunpack.c.l.b16 %v1189
  %v1538 = vunpack.c.l.b16 %v1190
  %v1539 = vunpack.c.h.b16 %v1190
  %v1540 = vunpack.c.l.b16 %v1191
  %v1541 = vunpack.c.h.b16 %v1191
  %v1542 = vunpack.c.l.b16 %v1192
  %v1543 = vpack.c.b16 %v1348, %v1343
  %v1544 = vpack.c.b16 %v1349, %v1344
  %v1545 = vpack.c.b16 %v1350, %v1345
  %v1546 = vpack.c.b16 %v1351, %v1346
  %v1547 = vpack.c.b16 %v1352, %v1347
  %v1548 = vpack.c.b16 %v1358, %v1353
  %v1549 = vpack.c.b16 %v1359, %v1354
  %v1550 = vpack.c.b16 %v1360, %v1355
  %v1551 = vpack.c.b16 %v1361, %v1356
  %v1552 = vpack.c.b16 %v1362, %v1357
  %v1553 = vpack.c.b16 %v1368, %v1363
  %v1554 = vpack.c.b16 %v1369, %v1364
  %v1555 = vpack.c.b16 %v1370, %v1365
  %v1556 = vpack.c.b16 %v1371, %v1366
  %v1557 = vpack.c.b16 %v1372, %v1367
  %v1558 = vpack.c.b16 %v1378, %v1373
  %v1559 = vpack.c.b16 %v1379, %v1374
  %v1560 = vpack.c.b16 %v1380, %v1375
  %v1561 = vpack.c.b16 %v1381, %v1376
  %v1562 = vpack.c.b16 %v1382, %v1377
  %v1563 = vpack.c.b16 %v1388, %v1383
  %v1564 = vpack.c.b16 %v1389, %v1384
  %v1565 = vpack.c.b16 %v1390, %v1385
  %v1566 = vpack.c.b16 %v1391, %v1386
  %v1567 = vpack.c.b16 %v1392, %v1387
  %v1568 = vpack.c.b16 %v1398, %v1393
  %v1569 = vpack.c.b16 %v1399, %v1394
  %v1570 = vpack.c.b16 %v1400, %v1395
  %v1571 = vpack.c.b16 %v1401, %v1396
  %v1572 = vpack.c.b16 %v1402, %v1397
  %v1573 = vpack.c.b16 %v1408, %v1403
  %v1574 = vpack.c.b16 %v1409, %v1404
  %v1575 = vpack.c.b16 %v1410, %v1405
  %v1576 = vpack.c.b16 %v1411, %v1406
  %v1577 = vpack.c.b16 %v1412, %v1407
  %v1578 = vpack.c.b16 %v1418, %v1413
  %v1579 = vpack.c.b16 %v1419, %v1414
  %v1580 = vpack.c.b16 %v1420, %v1415
  %v1581 = vpack.c.b16 %v1421, %v1416
  %v1582 = vpack.c.b16 %v1422, %v1417
  %v1583 = vpack.c.b16 %v1428, %v1423
  %v1584 = vpack.c.b16 %v1429, %v1424
  %v1585 = vpack.c.b16 %v1430, %v1425
  %v1586 = vpack.c.b16 %v1431, %v1426
  %v1587 = vpack.c.b16 %v1432, %v1427
  %v1588 = vpack.c.b16 %v1438, %v1433
  %v1589 = vpack.c.b16 %v1439, %v1434
  %v1590 = vpack.c.b16 %v1440, %v1435
  %v1591 = vpack.c.b16 %v1441, %v1436
  %v1592 = vpack.c.b16 %v1442, %v1437
  %v1593 = vpack.c.b16 %v1448, %v1443
  %v1594 = vpack.c.b16 %v1449, %v1444
  %v1595 = vpack.c.b16 %v1450, %v1445
  %v1596 = vpack.c.b16 %v1451, %v1446
  %v1597 = vpack.c.b16 %v1452, %v1447
  %v1598 = vpack.c.b16 %v1458, %v1453
  %v1599 = vpack.c.b16 %v1459, %v1454
  %v1600 = vpack.c.b16 %v1460, %v1455
  %v1601 = vpack.c.b16 %v1461, %v1456
  %v1602 = vpack.c.b16 %v1462, %v1457
  %v1603 = vpack.c.b16 %v1468, %v1463
  %v1604 = vpack.c.b16 %v1469, %v1464
  %v1605 = vpack.c.b16 %v1470, %v1465
  %v1606 = vpack.c.b16 %v1471, %v1466
  %v1607 = vpack.c.b16 %v1472, %v1467
  %v1608 = vpack.c.b16 %v1478, %v1473
  %v1609 = vpack.c.b16 %v1479, %v1474
  %v1610 = vpack.c.b16 %v1480, %v1475
  %v1611 = vpack.c.b16 %v1481, %v1476
  %v1612 = vpack.c.b16 %v1482, %v1477
  %v1613 = vpack.c.b16 %v1488, %v1483
  %v1614 = vpack.c.b16 %v1489, %v1484
  %v1615 = vpack.c.b16 %v1490, %v1485
  %v1616 = vpack.c.b16 %v1491, %v1486
  %v1617 = vpack.c.b16 %v1492, %v1487
  %v1618 = vpack.c.b16 %v1498, %v1493
  %v1619 = vpack.c.b16 %v1499, %v1494
  %v1620 = vpack.c.b16 %v1500, %v1495
  %v1621 = vpack.c.b16 %v1501, %v1496
  %v1622 = vpack.c.b16 %v1502, %v1497
  %v1623 = vpack.c.b16 %v1508, %v1503
  %v1624 = vpack.c.b16 %v1509, %v1504
  %v1625 = vpack.c.b16 %v1510, %v1505
  %v1626 = vpack.c.b16 %v1511, %v1506
  %v1627 = vpack.c.b16 %v1512, %v1507
  %v1628 = vpack.c.b16 %v1518, %v1513
  %v1629 = vpack.c.b16 %v1519, %v1514
  %v1630 = vpack.c.b16 %v1520, %v1515
  %v1631 = vpack.c.b16 %v1521, %v1516
  %v1632 = vpack.c.b16 %v1522, %v1517
  %v1633 = vpack.c.b16 %v1528, %v1523
  %v1634 = vpack.c.b16 %v1529, %v1524
  %v1635 = vpack.c.b16 %v1530, %v1525
  %v1636 = vpack.c.b16 %v1531, %v1526
  %v1637 = vpack.c.b16 %v1532, %v1527
  %v1638 = vpack.c.b16 %v1538, %v1533
  %v1639 = vpack.c.b16 %v1539, %v1534
  %v1640 = vpack.c.b16 %v1540, %v1535
  %v1641 = vpack.c.b16 %v1541, %v1536
  %v1642 = vpack.c.b16 %v1542, %v1537
  %v1744 = vsel %vm134, %v1072, 0
  %1746 = vmatprep.subr.bf16.mxu0 %v1579
  %1747 = vmatpush1.bf16.msra.mxu0 %v1578
  %1748 = vmatprep.subr.bf16.mxu0 %v1574
  %1749 = vmatpush1.bf16.msra.mxu0 %v1573
  %1750 = vmatprep.subr.bf16.mxu0 %v1569
  %1751 = vmatpush1.bf16.msra.mxu0 %v1568
  %1752 = vmatprep.subr.bf16.mxu0 %v1564
  %1753 = vmatpush1.bf16.msra.mxu0 %v1563
  %1754 = vmatprep.subr.bf16.mxu0 %v1559
  %1755 = vmatpush1.bf16.msra.mxu0 %v1558
  %1756 = vmatprep.subr.bf16.mxu0 %v1554
  %1757 = vmatpush1.bf16.msra.mxu0 %v1553
  %1758 = vmatprep.subr.bf16.mxu0 %v1549
  %1759 = vmatpush1.bf16.msra.mxu0 %v1548
  %1760 = vmatprep.subr.bf16.mxu0 %v1544
  %1761 = vmatpush1.bf16.msra.mxu0 %v1543
  %1762 = vmatprep.subr.bf16.mxu0 %v1619
  %1763 = vmatpush2.bf16.msra.mxu0 %v1618
  %1764 = vmatprep.subr.bf16.mxu0 %v1614
  %1765 = vmatpush2.bf16.msra.mxu0 %v1613
  %1766 = vmatprep.subr.bf16.mxu0 %v1609
  %1767 = vmatpush2.bf16.msra.mxu0 %v1608
  %1768 = vmatprep.subr.bf16.mxu0 %v1604
  %1769 = vmatpush2.bf16.msra.mxu0 %v1603
  %1770 = vmatprep.subr.bf16.mxu0 %v1599
  %1771 = vmatpush2.bf16.msra.mxu0 %v1598
  %1772 = vmatprep.subr.bf16.mxu0 %v1594
  %1773 = vmatpush2.bf16.msra.mxu0 %v1593
  %1774 = vmatprep.subr.bf16.mxu0 %v1589
  %1775 = vmatpush2.bf16.msra.mxu0 %v1588
  %1776 = vmatprep.subr.bf16.mxu0 %v1584
  %1777 = vmatpush2.bf16.msra.mxu0 %v1583
  %1778 = vmatprep.mubr.bf16.mxu0 %v1071
  %1779 = vmatmul.mubr.bf16.gmra.mxu0 %v1070
  %v1780 = vpop.f32.mrf.mxu0
  %v1781 = vadd.f32 %v1201, %v1780
  %v1782 = vpop.f32.mrf.mxu0
  %v1783 = vadd.f32 %v1205, %v1782
  %v1784 = vpop.f32.mrf.mxu0
  %v1785 = vpop.f32.mrf.mxu0
  %1786 = vdwg.mxu0
  %1787 = vmatprep.subr.bf16.mxu0 0
  %1788 = vmatpush1.bf16.msra.mxu0 0
  %1789 = vmatprep.subr.bf16.mxu0 0
  %1790 = vmatpush1.bf16.msra.mxu0 0
  %1791 = vmatprep.subr.bf16.mxu0 0
  %1792 = vmatpush1.bf16.msra.mxu0 0
  %1793 = vmatprep.subr.bf16.mxu0 0
  %1794 = vmatpush1.bf16.msra.mxu0 0
  %1795 = vmatprep.subr.bf16.mxu0 %v1639
  %1796 = vmatpush1.bf16.msra.mxu0 %v1638
  %1797 = vmatprep.subr.bf16.mxu0 %v1634
  %1798 = vmatpush1.bf16.msra.mxu0 %v1633
  %1799 = vmatprep.subr.bf16.mxu0 %v1629
  %1800 = vmatpush1.bf16.msra.mxu0 %v1628
  %1801 = vmatprep.subr.bf16.mxu0 %v1624
  %1802 = vmatpush1.bf16.msra.mxu0 %v1623
  %1803 = vmatprep.subr.bf16.mxu0 0
  %1804 = vmatpush2.bf16.msra.mxu0 0
  %1805 = vmatprep.subr.bf16.mxu0 0
  %1806 = vmatpush2.bf16.msra.mxu0 0
  %1807 = vmatprep.subr.bf16.mxu0 0
  %1808 = vmatpush2.bf16.msra.mxu0 0
  %1809 = vmatprep.subr.bf16.mxu0 0
  %1810 = vmatpush2.bf16.msra.mxu0 0
  %1811 = vmatprep.subr.bf16.mxu0 0
  %1812 = vmatpush2.bf16.msra.mxu0 0
  %1813 = vmatprep.subr.bf16.mxu0 0
  %1814 = vmatpush2.bf16.msra.mxu0 0
  %1815 = vmatprep.subr.bf16.mxu0 0
  %1816 = vmatpush2.bf16.msra.mxu0 0
  %1817 = vmatprep.subr.bf16.mxu0 0
  %1818 = vmatpush2.bf16.msra.mxu0 0
  %1819 = vmatprep.mubr.bf16.mxu0 0
  %1820 = vmatmul.mubr.bf16.gmra.mxu0 %v1744
  %v1821 = vpop.f32.mrf.mxu0
  %v1822 = vadd.f32 %v1781, %v1821
  %v1823 = vpop.f32.mrf.mxu0
  %v1824 = vadd.f32 %v1783, %v1823
  %v1825 = vpop.f32.mrf.mxu0
  %v1826 = vpop.f32.mrf.mxu0
  %1827 = vdwg.mxu0
  %1828 = vmatprep.subr.bf16.mxu0 %v1581
  %1829 = vmatpush1.bf16.msra.mxu0 %v1580
  %1830 = vmatprep.subr.bf16.mxu0 %v1576
  %1831 = vmatpush1.bf16.msra.mxu0 %v1575
  %1832 = vmatprep.subr.bf16.mxu0 %v1571
  %1833 = vmatpush1.bf16.msra.mxu0 %v1570
  %1834 = vmatprep.subr.bf16.mxu0 %v1566
  %1835 = vmatpush1.bf16.msra.mxu0 %v1565
  %1836 = vmatprep.subr.bf16.mxu0 %v1561
  %1837 = vmatpush1.bf16.msra.mxu0 %v1560
  %1838 = vmatprep.subr.bf16.mxu0 %v1556
  %1839 = vmatpush1.bf16.msra.mxu0 %v1555
  %1840 = vmatprep.subr.bf16.mxu0 %v1551
  %1841 = vmatpush1.bf16.msra.mxu0 %v1550
  %1842 = vmatprep.subr.bf16.mxu0 %v1546
  %1843 = vmatpush1.bf16.msra.mxu0 %v1545
  %1844 = vmatprep.subr.bf16.mxu0 %v1621
  %1845 = vmatpush2.bf16.msra.mxu0 %v1620
  %1846 = vmatprep.subr.bf16.mxu0 %v1616
  %1847 = vmatpush2.bf16.msra.mxu0 %v1615
  %1848 = vmatprep.subr.bf16.mxu0 %v1611
  %1849 = vmatpush2.bf16.msra.mxu0 %v1610
  %1850 = vmatprep.subr.bf16.mxu0 %v1606
  %1851 = vmatpush2.bf16.msra.mxu0 %v1605
  %1852 = vmatprep.subr.bf16.mxu0 %v1601
  %1853 = vmatpush2.bf16.msra.mxu0 %v1600
  %1854 = vmatprep.subr.bf16.mxu0 %v1596
  %1855 = vmatpush2.bf16.msra.mxu0 %v1595
  %1856 = vmatprep.subr.bf16.mxu0 %v1591
  %1857 = vmatpush2.bf16.msra.mxu0 %v1590
  %1858 = vmatprep.subr.bf16.mxu0 %v1586
  %1859 = vmatpush2.bf16.msra.mxu0 %v1585
  %1860 = vmatprep.mubr.bf16.mxu0 %v1071
  %1861 = vmatmul.mubr.bf16.gmra.mxu0 %v1070
  %v1862 = vpop.f32.mrf.mxu0
  %v1863 = vadd.f32 %v1209, %v1862
  %v1864 = vpop.f32.mrf.mxu0
  %v1865 = vadd.f32 %v1213, %v1864
  %v1866 = vpop.f32.mrf.mxu0
  %v1867 = vpop.f32.mrf.mxu0
  %1868 = vdwg.mxu0
  %1869 = vmatprep.subr.bf16.mxu0 0
  %1870 = vmatpush1.bf16.msra.mxu0 0
  %1871 = vmatprep.subr.bf16.mxu0 0
  %1872 = vmatpush1.bf16.msra.mxu0 0
  %1873 = vmatprep.subr.bf16.mxu0 0
  %1874 = vmatpush1.bf16.msra.mxu0 0
  %1875 = vmatprep.subr.bf16.mxu0 0
  %1876 = vmatpush1.bf16.msra.mxu0 0
  %1877 = vmatprep.subr.bf16.mxu0 %v1641
  %1878 = vmatpush1.bf16.msra.mxu0 %v1640
  %1879 = vmatprep.subr.bf16.mxu0 %v1636
  %1880 = vmatpush1.bf16.msra.mxu0 %v1635
  %1881 = vmatprep.subr.bf16.mxu0 %v1631
  %1882 = vmatpush1.bf16.msra.mxu0 %v1630
  %1883 = vmatprep.subr.bf16.mxu0 %v1626
  %1884 = vmatpush1.bf16.msra.mxu0 %v1625
  %1885 = vmatprep.subr.bf16.mxu0 0
  %1886 = vmatpush2.bf16.msra.mxu0 0
  %1887 = vmatprep.subr.bf16.mxu0 0
  %1888 = vmatpush2.bf16.msra.mxu0 0
  %1889 = vmatprep.subr.bf16.mxu0 0
  %1890 = vmatpush2.bf16.msra.mxu0 0
  %1891 = vmatprep.subr.bf16.mxu0 0
  %1892 = vmatpush2.bf16.msra.mxu0 0
  %1893 = vmatprep.subr.bf16.mxu0 0
  %1894 = vmatpush2.bf16.msra.mxu0 0
  %1895 = vmatprep.subr.bf16.mxu0 0
  %1896 = vmatpush2.bf16.msra.mxu0 0
  %1897 = vmatprep.subr.bf16.mxu0 0
  %1898 = vmatpush2.bf16.msra.mxu0 0
  %1899 = vmatprep.subr.bf16.mxu0 0
  %1900 = vmatpush2.bf16.msra.mxu0 0
  %1901 = vmatprep.mubr.bf16.mxu0 0
  %1902 = vmatmul.mubr.bf16.gmra.mxu0 %v1744
  %v1903 = vpop.f32.mrf.mxu0
  %v1904 = vadd.f32 %v1863, %v1903
  %v1905 = vpop.f32.mrf.mxu0
  %v1906 = vadd.f32 %v1865, %v1905
  %v1907 = vpop.f32.mrf.mxu0
  %v1908 = vpop.f32.mrf.mxu0
  %1909 = vdwg.mxu0
  %1910 = vmatprep.subr.bf16.mxu0 0
  %1911 = vmatpush1.bf16.msra.mxu0 %v1582
  %1912 = vmatprep.subr.bf16.mxu0 0
  %1913 = vmatpush1.bf16.msra.mxu0 %v1577
  %1914 = vmatprep.subr.bf16.mxu0 0
  %1915 = vmatpush1.bf16.msra.mxu0 %v1572
  %1916 = vmatprep.subr.bf16.mxu0 0
  %1917 = vmatpush1.bf16.msra.mxu0 %v1567
  %1918 = vmatprep.subr.bf16.mxu0 0
  %1919 = vmatpush1.bf16.msra.mxu0 %v1562
  %1920 = vmatprep.subr.bf16.mxu0 0
  %1921 = vmatpush1.bf16.msra.mxu0 %v1557
  %1922 = vmatprep.subr.bf16.mxu0 0
  %1923 = vmatpush1.bf16.msra.mxu0 %v1552
  %1924 = vmatprep.subr.bf16.mxu0 0
  %1925 = vmatpush1.bf16.msra.mxu0 %v1547
  %1926 = vmatprep.subr.bf16.mxu0 0
  %1927 = vmatpush2.bf16.msra.mxu0 %v1622
  %1928 = vmatprep.subr.bf16.mxu0 0
  %1929 = vmatpush2.bf16.msra.mxu0 %v1617
  %1930 = vmatprep.subr.bf16.mxu0 0
  %1931 = vmatpush2.bf16.msra.mxu0 %v1612
  %1932 = vmatprep.subr.bf16.mxu0 0
  %1933 = vmatpush2.bf16.msra.mxu0 %v1607
  %1934 = vmatprep.subr.bf16.mxu0 0
  %1935 = vmatpush2.bf16.msra.mxu0 %v1602
  %1936 = vmatprep.subr.bf16.mxu0 0
  %1937 = vmatpush2.bf16.msra.mxu0 %v1597
  %1938 = vmatprep.subr.bf16.mxu0 0
  %1939 = vmatpush2.bf16.msra.mxu0 %v1592
  %1940 = vmatprep.subr.bf16.mxu0 0
  %1941 = vmatpush2.bf16.msra.mxu0 %v1587
  %1942 = vmatprep.mubr.bf16.mxu0 %v1071
  %1943 = vmatmul.mubr.bf16.gmra.mxu0 %v1070
  %v1944 = vpop.f32.mrf.mxu0
  %v1945 = vadd.f32 %v1217, %v1944
  %v1946 = vpop.f32.mrf.mxu0
  %v1947 = vpop.f32.mrf.mxu0
  %v1948 = vpop.f32.mrf.mxu0
  %1949 = vdwg.mxu0
  %1950 = vmatprep.subr.bf16.mxu0 0
  %1951 = vmatpush1.bf16.msra.mxu0 0
  %1952 = vmatprep.subr.bf16.mxu0 0
  %1953 = vmatpush1.bf16.msra.mxu0 0
  %1954 = vmatprep.subr.bf16.mxu0 0
  %1955 = vmatpush1.bf16.msra.mxu0 0
  %1956 = vmatprep.subr.bf16.mxu0 0
  %1957 = vmatpush1.bf16.msra.mxu0 0
  %1958 = vmatprep.subr.bf16.mxu0 0
  %1959 = vmatpush1.bf16.msra.mxu0 %v1642
  %1960 = vmatprep.subr.bf16.mxu0 0
  %1961 = vmatpush1.bf16.msra.mxu0 %v1637
  %1962 = vmatprep.subr.bf16.mxu0 0
  %1963 = vmatpush1.bf16.msra.mxu0 %v1632
  %1964 = vmatprep.subr.bf16.mxu0 0
  %1965 = vmatpush1.bf16.msra.mxu0 %v1627
  %1966 = vmatprep.subr.bf16.mxu0 0
  %1967 = vmatpush2.bf16.msra.mxu0 0
  %1968 = vmatprep.subr.bf16.mxu0 0
  %1969 = vmatpush2.bf16.msra.mxu0 0
  %1970 = vmatprep.subr.bf16.mxu0 0
  %1971 = vmatpush2.bf16.msra.mxu0 0
  %1972 = vmatprep.subr.bf16.mxu0 0
  %1973 = vmatpush2.bf16.msra.mxu0 0
  %1974 = vmatprep.subr.bf16.mxu0 0
  %1975 = vmatpush2.bf16.msra.mxu0 0
  %1976 = vmatprep.subr.bf16.mxu0 0
  %1977 = vmatpush2.bf16.msra.mxu0 0
  %1978 = vmatprep.subr.bf16.mxu0 0
  %1979 = vmatpush2.bf16.msra.mxu0 0
  %1980 = vmatprep.subr.bf16.mxu0 0
  %1981 = vmatpush2.bf16.msra.mxu0 0
  %1982 = vmatprep.mubr.bf16.mxu0 0
  %1983 = vmatmul.mubr.bf16.gmra.mxu0 %v1744
  %v1984 = vpop.f32.mrf.mxu0
  %v1985 = vadd.f32 %v1945, %v1984
  %v1986 = vpop.f32.mrf.mxu0
  %v1987 = vpop.f32.mrf.mxu0
  %v1988 = vpop.f32.mrf.mxu0
  %1989 = vdwg.mxu0
  %v1990 = vmax.f32 %v1822, 0.0
  %v1991 = vmax.f32 %v1824, 0.0
  %v1992 = vmax.f32 %v1904, 0.0
  %v1993 = vmax.f32 %v1906, 0.0
  %v1994 = vmax.f32 %v1985, 0.0
  %v1995 = vpack.c.bf16 %v1990, %v1990
  %v1996 = vpack.c.bf16 %v1991, %v1991
  %v1997 = vpack.c.bf16 %v1992, %v1992
  %v1998 = vpack.c.bf16 %v1993, %v1993
  %v1999 = vpack.c.bf16 %v1994, %v1994
  %v2000 = vld [vmem:[%s8] sm:$0xf]
  %v2001 = vld [vmem:[%s8 + $0x4] sm:$0xf]
  %v2002 = vld [vmem:[%s8 + $0x8] sm:$0xf]
  %v2003 = vld [vmem:[%s8 + $0xc] sm:$0xf]
  %v2004 = vld [vmem:[%s8 + $0x10] sm:$0xf]
  %v2005 = vld [vmem:[%s8 + $0x14] sm:$0xf]
  %v2006 = vld [vmem:[%s8 + $0x18] sm:$0xf]
  %v2007 = vld [vmem:[%s8 + $0x1c] sm:$0xf]
  %v2008 = vld [vmem:[%s8 + $0x20] sm:$0xf]
  %v2009 = vld [vmem:[%s8 + $0x24] sm:$0xf]
  %v2010 = vld [vmem:[%s8 + $0x28] sm:$0xf]
  %v2011 = vld [vmem:[%s8 + $0x2c] sm:$0xf]
  %v2012 = vld [vmem:[%s8 + $0x30] sm:$0xf]
  %v2013 = vld [vmem:[%s8 + $0x34] sm:$0xf]
  %v2014 = vld [vmem:[%s8 + $0x38] sm:$0xf]
  %v2015 = vld [vmem:[%s8 + $0x3c] sm:$0xf]
  %v2016 = vld [vmem:[%s8 + $0x40] sm:$0xf]
  %v2017 = vld [vmem:[%s8 + $0x44] sm:$0xf]
  %v2018 = vld [vmem:[%s8 + $0x48] sm:$0xf]
  %v2019 = vld [vmem:[%s8 + $0x4c] sm:$0xf]
  %v2020 = vld [vmem:[%s8 + $0x50] sm:$0xf]
  %v2021 = vld [vmem:[%s8 + $0x54] sm:$0xf]
  %v2022 = vld [vmem:[%s8 + $0x58] sm:$0xf]
  %v2023 = vld [vmem:[%s8 + $0x5c] sm:$0xf]
  %v2024 = vld [vmem:[%s8 + $0x60] sm:$0xf]
  %v2025 = vld [vmem:[%s8 + $0x64] sm:$0xf]
  %v2026 = vld [vmem:[%s8 + $0x68] sm:$0xf]
  %v2027 = vld [vmem:[%s8 + $0x6c] sm:$0xf]
  %v2028 = vld [vmem:[%s8 + $0x70] sm:$0xf]
  %v2029 = vld [vmem:[%s8 + $0x74] sm:$0xf]
  %v2030 = vld [vmem:[%s8 + $0x78] sm:$0xf]
  %v2031 = vld [vmem:[%s8 + $0x7c] sm:$0xf]
  %v2032 = vld [vmem:[%s8 + $0x80] sm:$0xf]
  %v2033 = vld [vmem:[%s8 + $0x84] sm:$0xf]
  %v2034 = vld [vmem:[%s8 + $0x88] sm:$0xf]
  %v2035 = vld [vmem:[%s8 + $0x8c] sm:$0xf]
  %v2036 = vld [vmem:[%s8 + $0x90] sm:$0xf]
  %v2037 = vld [vmem:[%s8 + $0x94] sm:$0xf]
  %v2038 = vld [vmem:[%s8 + $0x98] sm:$0xf]
  %v2039 = vld [vmem:[%s8 + $0x9c] sm:$0xf]
  %v2040 = vld [vmem:[%s8 + $0xa0] sm:$0xf]
  %v2041 = vld [vmem:[%s8 + $0xa4] sm:$0xf]
  %v2042 = vld [vmem:[%s8 + $0xa8] sm:$0xf]
  %v2043 = vld [vmem:[%s8 + $0xac] sm:$0xf]
  %v2044 = vld [vmem:[%s8 + $0xb0] sm:$0xf]
  %v2045 = vld [vmem:[%s8 + $0xb4] sm:$0xf]
  %v2046 = vld [vmem:[%s8 + $0xb8] sm:$0xf]
  %v2047 = vld [vmem:[%s8 + $0xbc] sm:$0xf]
  %v2048 = vld [vmem:[%s8 + $0xc0] sm:$0xf]
  %v2049 = vld [vmem:[%s8 + $0xc4] sm:$0xf]
  %v2050 = vld [vmem:[%s8 + $0xc8] sm:$0xf]
  %v2051 = vld [vmem:[%s8 + $0xcc] sm:$0xf]
  %v2052 = vld [vmem:[%s8 + $0xd0] sm:$0xf]
  %v2053 = vld [vmem:[%s8 + $0xd4] sm:$0xf]
  %v2054 = vld [vmem:[%s8 + $0xd8] sm:$0xf]
  %v2055 = vld [vmem:[%s8 + $0xdc] sm:$0xf]
  %v2056 = vld [vmem:[%s8 + $0xe0] sm:$0xf]
  %v2057 = vld [vmem:[%s8 + $0xe4] sm:$0xf]
  %v2058 = vld [vmem:[%s8 + $0xe8] sm:$0xf]
  %v2059 = vld [vmem:[%s8 + $0xec] sm:$0xf]
  %v2060 = vld [vmem:[%s8 + $0xf0] sm:$0xf]
  %v2061 = vld [vmem:[%s8 + $0xf4] sm:$0xf]
  %v2062 = vld [vmem:[%s8 + $0xf8] sm:$0xf]
  %v2063 = vld [vmem:[%s8 + $0xfc] sm:$0xf]
  %v2064 = vld [vmem:[%s8 + $0x100] sm:$0xf]
  %v2065 = vld [vmem:[%s8 + $0x104] sm:$0xf]
  %v2066 = vld [vmem:[%s8 + $0x108] sm:$0xf]
  %v2067 = vld [vmem:[%s8 + $0x10c] sm:$0xf]
  %v2068 = vld [vmem:[%s8 + $0x110] sm:$0xf]
  %v2069 = vld [vmem:[%s8 + $0x114] sm:$0xf]
  %v2070 = vld [vmem:[%s8 + $0x118] sm:$0xf]
  %v2071 = vld [vmem:[%s8 + $0x11c] sm:$0xf]
  %v2072 = vld [vmem:[%s8 + $0x120] sm:$0xf]
  %v2073 = vld [vmem:[%s8 + $0x124] sm:$0xf]
  %v2074 = vld [vmem:[%s8 + $0x128] sm:$0xf]
  %v2075 = vld [vmem:[%s8 + $0x12c] sm:$0xf]
  %v2076 = vld [vmem:[%s8 + $0x130] sm:$0xf]
  %v2077 = vld [vmem:[%s8 + $0x134] sm:$0xf]
  %v2078 = vld [vmem:[%s8 + $0x138] sm:$0xf]
  %v2079 = vld [vmem:[%s8 + $0x13c] sm:$0xf]
  %v2080 = vld [vmem:[%s1 + $0x6] ss:$0 sm:$0xff]
  %v2161 = vunpack.c.l.b16 %v2000
  %v2162 = vunpack.c.l.b16 %v2001
  %v2163 = vunpack.c.l.b16 %v2002
  %v2164 = vunpack.c.l.b16 %v2003
  %v2165 = vunpack.c.l.b16 %v2004
  %v2166 = vunpack.c.l.b16 %v2005
  %v2167 = vunpack.c.l.b16 %v2006
  %v2168 = vunpack.c.l.b16 %v2007
  %v2169 = vunpack.c.l.b16 %v2008
  %v2170 = vunpack.c.l.b16 %v2009
  %v2171 = vunpack.c.l.b16 %v2010
  %v2172 = vunpack.c.l.b16 %v2011
  %v2173 = vunpack.c.l.b16 %v2012
  %v2174 = vunpack.c.l.b16 %v2013
  %v2175 = vunpack.c.l.b16 %v2014
  %v2176 = vunpack.c.l.b16 %v2015
  %v2177 = vunpack.c.l.b16 %v2016
  %v2178 = vunpack.c.l.b16 %v2017
  %v2179 = vunpack.c.l.b16 %v2018
  %v2180 = vunpack.c.l.b16 %v2019
  %v2181 = vunpack.c.l.b16 %v2020
  %v2182 = vunpack.c.l.b16 %v2021
  %v2183 = vunpack.c.l.b16 %v2022
  %v2184 = vunpack.c.l.b16 %v2023
  %v2185 = vunpack.c.l.b16 %v2024
  %v2186 = vunpack.c.l.b16 %v2025
  %v2187 = vunpack.c.l.b16 %v2026
  %v2188 = vunpack.c.l.b16 %v2027
  %v2189 = vunpack.c.l.b16 %v2028
  %v2190 = vunpack.c.l.b16 %v2029
  %v2191 = vunpack.c.l.b16 %v2030
  %v2192 = vunpack.c.l.b16 %v2031
  %v2193 = vunpack.c.l.b16 %v2032
  %v2194 = vunpack.c.l.b16 %v2033
  %v2195 = vunpack.c.l.b16 %v2034
  %v2196 = vunpack.c.l.b16 %v2035
  %v2197 = vunpack.c.l.b16 %v2036
  %v2198 = vunpack.c.l.b16 %v2037
  %v2199 = vunpack.c.l.b16 %v2038
  %v2200 = vunpack.c.l.b16 %v2039
  %v2201 = vunpack.c.l.b16 %v2040
  %v2202 = vunpack.c.l.b16 %v2041
  %v2203 = vunpack.c.l.b16 %v2042
  %v2204 = vunpack.c.l.b16 %v2043
  %v2205 = vunpack.c.l.b16 %v2044
  %v2206 = vunpack.c.l.b16 %v2045
  %v2207 = vunpack.c.l.b16 %v2046
  %v2208 = vunpack.c.l.b16 %v2047
  %v2209 = vunpack.c.l.b16 %v2048
  %v2210 = vunpack.c.l.b16 %v2049
  %v2211 = vunpack.c.l.b16 %v2050
  %v2212 = vunpack.c.l.b16 %v2051
  %v2213 = vunpack.c.l.b16 %v2052
  %v2214 = vunpack.c.l.b16 %v2053
  %v2215 = vunpack.c.l.b16 %v2054
  %v2216 = vunpack.c.l.b16 %v2055
  %v2217 = vunpack.c.l.b16 %v2056
  %v2218 = vunpack.c.l.b16 %v2057
  %v2219 = vunpack.c.l.b16 %v2058
  %v2220 = vunpack.c.l.b16 %v2059
  %v2221 = vunpack.c.l.b16 %v2060
  %v2222 = vunpack.c.l.b16 %v2061
  %v2223 = vunpack.c.l.b16 %v2062
  %v2224 = vunpack.c.l.b16 %v2063
  %v2225 = vunpack.c.l.b16 %v2064
  %v2226 = vunpack.c.l.b16 %v2065
  %v2227 = vunpack.c.l.b16 %v2066
  %v2228 = vunpack.c.l.b16 %v2067
  %v2229 = vunpack.c.l.b16 %v2068
  %v2230 = vunpack.c.l.b16 %v2069
  %v2231 = vunpack.c.l.b16 %v2070
  %v2232 = vunpack.c.l.b16 %v2071
  %v2233 = vunpack.c.l.b16 %v2072
  %v2234 = vunpack.c.l.b16 %v2073
  %v2235 = vunpack.c.l.b16 %v2074
  %v2236 = vunpack.c.l.b16 %v2075
  %v2237 = vunpack.c.l.b16 %v2076
  %v2238 = vunpack.c.l.b16 %v2077
  %v2239 = vunpack.c.l.b16 %v2078
  %v2240 = vunpack.c.l.b16 %v2079
  %v2241 = vpack.c.b16 %v2162, %v2161
  %v2242 = vpack.c.b16 %v2164, %v2163
  %v2243 = vpack.c.b16 %v2166, %v2165
  %v2244 = vpack.c.b16 %v2168, %v2167
  %v2245 = vpack.c.b16 %v2170, %v2169
  %v2246 = vpack.c.b16 %v2172, %v2171
  %v2247 = vpack.c.b16 %v2174, %v2173
  %v2248 = vpack.c.b16 %v2176, %v2175
  %v2249 = vpack.c.b16 %v2178, %v2177
  %v2250 = vpack.c.b16 %v2180, %v2179
  %v2251 = vpack.c.b16 %v2182, %v2181
  %v2252 = vpack.c.b16 %v2184, %v2183
  %v2253 = vpack.c.b16 %v2186, %v2185
  %v2254 = vpack.c.b16 %v2188, %v2187
  %v2255 = vpack.c.b16 %v2190, %v2189
  %v2256 = vpack.c.b16 %v2192, %v2191
  %v2257 = vpack.c.b16 %v2194, %v2193
  %v2258 = vpack.c.b16 %v2196, %v2195
  %v2259 = vpack.c.b16 %v2198, %v2197
  %v2260 = vpack.c.b16 %v2200, %v2199
  %v2261 = vpack.c.b16 %v2202, %v2201
  %v2262 = vpack.c.b16 %v2204, %v2203
  %v2263 = vpack.c.b16 %v2206, %v2205
  %v2264 = vpack.c.b16 %v2208, %v2207
  %v2265 = vpack.c.b16 %v2210, %v2209
  %v2266 = vpack.c.b16 %v2212, %v2211
  %v2267 = vpack.c.b16 %v2214, %v2213
  %v2268 = vpack.c.b16 %v2216, %v2215
  %v2269 = vpack.c.b16 %v2218, %v2217
  %v2270 = vpack.c.b16 %v2220, %v2219
  %v2271 = vpack.c.b16 %v2222, %v2221
  %v2272 = vpack.c.b16 %v2224, %v2223
  %v2273 = vpack.c.b16 %v2226, %v2225
  %v2274 = vpack.c.b16 %v2228, %v2227
  %v2275 = vpack.c.b16 %v2230, %v2229
  %v2276 = vpack.c.b16 %v2232, %v2231
  %v2277 = vpack.c.b16 %v2234, %v2233
  %v2278 = vpack.c.b16 %v2236, %v2235
  %v2279 = vpack.c.b16 %v2238, %v2237
  %v2280 = vpack.c.b16 %v2240, %v2239
  %2321 = vmatprep.subr.bf16.mxu0 0
  %2322 = vmatpush1.bf16.msra.mxu0 %v2248
  %2323 = vmatprep.subr.bf16.mxu0 0
  %2324 = vmatpush1.bf16.msra.mxu0 %v2247
  %2325 = vmatprep.subr.bf16.mxu0 0
  %2326 = vmatpush1.bf16.msra.mxu0 %v2246
  %2327 = vmatprep.subr.bf16.mxu0 0
  %2328 = vmatpush1.bf16.msra.mxu0 %v2245
  %2329 = vmatprep.subr.bf16.mxu0 0
  %2330 = vmatpush1.bf16.msra.mxu0 %v2244
  %2331 = vmatprep.subr.bf16.mxu0 0
  %2332 = vmatpush1.bf16.msra.mxu0 %v2243
  %2333 = vmatprep.subr.bf16.mxu0 0
  %2334 = vmatpush1.bf16.msra.mxu0 %v2242
  %2335 = vmatprep.subr.bf16.mxu0 0
  %2336 = vmatpush1.bf16.msra.mxu0 %v2241
  %2337 = vmatprep.subr.bf16.mxu0 0
  %2338 = vmatpush2.bf16.msra.mxu0 %v2256
  %2339 = vmatprep.subr.bf16.mxu0 0
  %2340 = vmatpush2.bf16.msra.mxu0 %v2255
  %2341 = vmatprep.subr.bf16.mxu0 0
  %2342 = vmatpush2.bf16.msra.mxu0 %v2254
  %2343 = vmatprep.subr.bf16.mxu0 0
  %2344 = vmatpush2.bf16.msra.mxu0 %v2253
  %2345 = vmatprep.subr.bf16.mxu0 0
  %2346 = vmatpush2.bf16.msra.mxu0 %v2252
  %2347 = vmatprep.subr.bf16.mxu0 0
  %2348 = vmatpush2.bf16.msra.mxu0 %v2251
  %2349 = vmatprep.subr.bf16.mxu0 0
  %2350 = vmatpush2.bf16.msra.mxu0 %v2250
  %2351 = vmatprep.subr.bf16.mxu0 0
  %2352 = vmatpush2.bf16.msra.mxu0 %v2249
  %2353 = vmatprep.mubr.bf16.mxu0 %v1996
  %2354 = vmatmul.mubr.bf16.gmra.mxu0 %v1995
  %v2355 = vpop.f32.mrf.mxu0
  %v2356 = vadd.f32 %v2080, %v2355
  %v2357 = vpop.f32.mrf.mxu0
  %v2358 = vpop.f32.mrf.mxu0
  %v2359 = vpop.f32.mrf.mxu0
  %2360 = vdwg.mxu0
  %2361 = vmatprep.subr.bf16.mxu0 0
  %2362 = vmatpush1.bf16.msra.mxu0 %v2264
  %2363 = vmatprep.subr.bf16.mxu0 0
  %2364 = vmatpush1.bf16.msra.mxu0 %v2263
  %2365 = vmatprep.subr.bf16.mxu0 0
  %2366 = vmatpush1.bf16.msra.mxu0 %v2262
  %2367 = vmatprep.subr.bf16.mxu0 0
  %2368 = vmatpush1.bf16.msra.mxu0 %v2261
  %2369 = vmatprep.subr.bf16.mxu0 0
  %2370 = vmatpush1.bf16.msra.mxu0 %v2260
  %2371 = vmatprep.subr.bf16.mxu0 0
  %2372 = vmatpush1.bf16.msra.mxu0 %v2259
  %2373 = vmatprep.subr.bf16.mxu0 0
  %2374 = vmatpush1.bf16.msra.mxu0 %v2258
  %2375 = vmatprep.subr.bf16.mxu0 0
  %2376 = vmatpush1.bf16.msra.mxu0 %v2257
  %2377 = vmatprep.subr.bf16.mxu0 0
  %2378 = vmatpush2.bf16.msra.mxu0 %v2272
  %2379 = vmatprep.subr.bf16.mxu0 0
  %2380 = vmatpush2.bf16.msra.mxu0 %v2271
  %2381 = vmatprep.subr.bf16.mxu0 0
  %2382 = vmatpush2.bf16.msra.mxu0 %v2270
  %2383 = vmatprep.subr.bf16.mxu0 0
  %2384 = vmatpush2.bf16.msra.mxu0 %v2269
  %2385 = vmatprep.subr.bf16.mxu0 0
  %2386 = vmatpush2.bf16.msra.mxu0 %v2268
  %2387 = vmatprep.subr.bf16.mxu0 0
  %2388 = vmatpush2.bf16.msra.mxu0 %v2267
  %2389 = vmatprep.subr.bf16.mxu0 0
  %2390 = vmatpush2.bf16.msra.mxu0 %v2266
  %2391 = vmatprep.subr.bf16.mxu0 0
  %2392 = vmatpush2.bf16.msra.mxu0 %v2265
  %2393 = vmatprep.mubr.bf16.mxu0 %v1998
  %2394 = vmatmul.mubr.bf16.gmra.mxu0 %v1997
  %v2395 = vpop.f32.mrf.mxu0
  %v2396 = vadd.f32 %v2356, %v2395
  %v2397 = vpop.f32.mrf.mxu0
  %v2398 = vpop.f32.mrf.mxu0
  %v2399 = vpop.f32.mrf.mxu0
  %2400 = vdwg.mxu0
  %2401 = vmatprep.subr.bf16.mxu0 0
  %2402 = vmatpush1.bf16.msra.mxu0 %v2280
  %2403 = vmatprep.subr.bf16.mxu0 0
  %2404 = vmatpush1.bf16.msra.mxu0 %v2279
  %2405 = vmatprep.subr.bf16.mxu0 0
  %2406 = vmatpush1.bf16.msra.mxu0 %v2278
  %2407 = vmatprep.subr.bf16.mxu0 0
  %2408 = vmatpush1.bf16.msra.mxu0 %v2277
  %2409 = vmatprep.subr.bf16.mxu0 0
  %2410 = vmatpush1.bf16.msra.mxu0 %v2276
  %2411 = vmatprep.subr.bf16.mxu0 0
  %2412 = vmatpush1.bf16.msra.mxu0 %v2275
  %2413 = vmatprep.subr.bf16.mxu0 0
  %2414 = vmatpush1.bf16.msra.mxu0 %v2274
  %2415 = vmatprep.subr.bf16.mxu0 0
  %2416 = vmatpush1.bf16.msra.mxu0 %v2273
  %2417 = vmatprep.subr.bf16.mxu0 0
  %2418 = vmatpush2.bf16.msra.mxu0 0
  %2419 = vmatprep.subr.bf16.mxu0 0
  %2420 = vmatpush2.bf16.msra.mxu0 0
  %2421 = vmatprep.subr.bf16.mxu0 0
  %2422 = vmatpush2.bf16.msra.mxu0 0
  %2423 = vmatprep.subr.bf16.mxu0 0
  %2424 = vmatpush2.bf16.msra.mxu0 0
  %2425 = vmatprep.subr.bf16.mxu0 0
  %2426 = vmatpush2.bf16.msra.mxu0 0
  %2427 = vmatprep.subr.bf16.mxu0 0
  %2428 = vmatpush2.bf16.msra.mxu0 0
  %2429 = vmatprep.subr.bf16.mxu0 0
  %2430 = vmatpush2.bf16.msra.mxu0 0
  %2431 = vmatprep.subr.bf16.mxu0 0
  %2432 = vmatpush2.bf16.msra.mxu0 0
  %2433 = vmatprep.mubr.bf16.mxu0 0
  %2434 = vmatmul.mubr.bf16.gmra.mxu0 %v1999
  %v2435 = vpop.f32.mrf.mxu0
  %v2436 = vadd.f32 %v2396, %v2435
  %v2437 = vpop.f32.mrf.mxu0
  %v2438 = vpop.f32.mrf.mxu0
  %v2439 = vpop.f32.mrf.mxu0
  %2440 = vdwg.mxu0
  %2441 = vst.msk [vmem:[%s10] sm:$0xff] %vm134, %v2436
  // Predicated region
  $region38: #{forward.1} parent=0 // pred_check
    _
  $region39: #{forward.1} parent=0 // pred_check_branch
    %2443 = sbr.rel (0) target = $region41
  $region40: #{forward.1} parent=0 // pred_region
    _
  $region41: #{forward.1} parent=0 // pred_fallthru
    _
  // Predicated region
  $region42: #{forward.1} parent=0 // pred_check
    _
  $region43: #{forward.1} parent=0 // pred_check_branch
    %2445 = sbr.rel (0) target = $region45
  $region44: #{forward.1} parent=0 // pred_region
    _
  $region45: #{forward.1} parent=0 // pred_fallthru
    _
  // Predicated region
  $region46: #{forward.1} parent=0 // pred_check
    _
  $region47: #{forward.1} parent=0 // pred_check_branch
    %2447 = sbr.rel (0) target = $region49
  $region48: #{forward.1} parent=0 // pred_region
    _
  $region49: #{forward.1} parent=0 // pred_fallthru
    _
  // Predicated region
  $region50: #{forward.1} parent=0 // pred_check
    _
  $region51: #{forward.1} parent=0 // pred_check_branch
    %2449 = sbr.rel (0) target = $region53
  $region52: #{forward.1} parent=0 // pred_region
    _
  $region53: #{forward.1} parent=0 // pred_fallthru
    _

</llo_original>
